<compile_context>
chip_gen: v6e
topology: v6e:2x2x1
jax: 0.10.0
libtpu: 0.0.40
codegen_flags: <defaults>
</compile_context>

<pallas_src>
from functools import partial

import jax
import jax.numpy as jnp
from jax.experimental import pallas as pl
from jax.experimental.pallas import tpu as pltpu


# ----------------------------- kernel body ---------------------------------


def _deblock_kernel(x_ref, w1_ref, w2_ref, sb1_ref, sb2_ref, out_ref, *,
                    nb, H, L):
    """One grid step = `nb` batch elements, fully lane-dense (L = W*C).

    x_ref  : (nb, H, L) f32   activations, NHWC with (w, c) folded onto lanes
    w1_ref : (3, L, L)  bf16  fused (W-shift + conv1 weight) RHS, one block per H-tap
    w2_ref : (3, L, L)  bf16  same for conv2
    sb1_ref: (2, L)     f32   row0 = BN1 scale, row1 = BN1 bias (conv1 bias folded)
    sb2_ref: (2, L)     f32   BN2 scale / bias (conv2 bias folded)
    out_ref: (nb, H, L)
    """
    M = nb * H

    # Hoist the per-channel scale/bias loads once.
    s1, b1 = sb1_ref[0:1, :], sb1_ref[1:2, :]
    s2, b2 = sb2_ref[0:1, :], sb2_ref[1:2, :]

    def conv_bn_relu(x3, w_ref, scale, bias):
        # x3: (nb, H, L) bf16.  y[h] = x[h-1]@W0 + x[h]@W1 + x[h+1]@W2, where
        # each W_k is (L, L) and folds the W-direction 3-tap shift + its zero
        # padding.  H-boundary zero rows are built in-register; the 3L-wide
        # im2col LHS is never materialized (three K=L matmuls instead).
        zrow = jnp.zeros((nb, 1, L), jnp.bfloat16)
        up = jnp.concatenate([zrow, x3[:, :H - 1, :]], axis=1).reshape(M, L)   # x[h-1]
        dn = jnp.concatenate([x3[:, 1:, :], zrow], axis=1).reshape(M, L)       # x[h+1]
        acc = jnp.dot(up, w_ref[0], preferred_element_type=jnp.float32)
        acc = acc + jnp.dot(x3.reshape(M, L), w_ref[1],
                            preferred_element_type=jnp.float32)
        acc = acc + jnp.dot(dn, w_ref[2], preferred_element_type=jnp.float32)
        # Fused (conv bias + BN) scale/bias + ReLU on the f32 accumulator.
        return jnp.maximum(acc * scale + bias, 0.0)                            # (M, L) f32

    y1 = conv_bn_relu(x_ref[...].astype(jnp.bfloat16), w1_ref, s1, b1)
    y2 = conv_bn_relu(y1.astype(jnp.bfloat16).reshape(nb, H, L), w2_ref, s2, b2)

    # Residual: re-read the input block (still resident in VMEM) instead of
    # keeping a live f32 copy across both conv matmul chains.
    out_ref[...] = (y2.reshape(nb, H, L) + x_ref[...]).astype(out_ref.dtype)


# --------------------------- parameter folding ------------------------------


def _fused_conv_rhs(conv_w, W):
    """PyTorch (Co, Ci, 3, 3) conv weight -> (3, W*Ci, W*Co) bf16 matmul RHS.

    Block kh applies the whole W-direction 3-tap conv (shift + zero padding
    folded into a banded matrix) to input rows x[h + kh - 1]:
      row index = (w_in, ci), column index = (w_out, co).
    """
    C = conv_w.shape[1]
    wt = jnp.transpose(conv_w, (2, 3, 1, 0)).astype(jnp.float32)    # (kh, kw, ci, co)
    kw = jnp.arange(3)[:, None, None]
    w_in = jnp.arange(W)[None, :, None]
    w_out = jnp.arange(W)[None, None, :]
    sel = (w_in == w_out + kw - 1).astype(jnp.float32)              # (kw, w_in, w_out)
    rhs = jnp.einsum("kpw,hkio->hpiwo", sel, wt)                    # (kh, w_in, ci, w_out, co)
    return rhs.reshape(3, W * C, W * C).astype(jnp.bfloat16)


def _fold_bn(conv_b, gamma, beta, mean, var, W, eps):
    """Fold conv bias + inference BN into (2, W*C) scale/bias, lane-tiled."""
    scale = gamma / jnp.sqrt(var + eps)
    bias = (conv_b - mean) * scale + beta
    sb = jnp.stack([scale, bias]).astype(jnp.float32)               # (2, C)
    return jnp.tile(sb, (1, W))                                     # (2, W*C)


# ------------------------------ tiling logic --------------------------------


def _deblock_vmem_bytes(nb, H, L):
    """Upper-bound VMEM footprint of one grid step (bytes).

    Counts: double-buffered in/out activation blocks, the two resident bf16
    RHS tensors (also double-buffered by the pipeline), the scale/bias tiles,
    and a generous bound for in-kernel bf16 shifted copies / f32 partials.
    """
    act = nb * H * L * 4
    blocks = 2 * 2 * act                 # input + output blocks, x2 buffers
    interm = 6 * act                     # bf16 up/dn copies + f32 acc + y1/y2
    weights = 2 * 2 * 3 * L * L * 2      # two (3, L, L) bf16 RHS, x2 buffers
    scales = 2 * 2 * 8 * L * 4           # (2, L) scale/bias, sublane-padded
    return blocks + interm + weights + scales


_VMEM_BUDGET = 20 << 20   # per-step budget: safe on v7x (64 MiB physical,
                          # 32 MiB default scoped); never binding on v5e/v6e.


def _pick_batch_block(N, H, L):
    """Choose the per-step batch block `nb` and batch padding.

    Priorities: (1) full per-step footprint fits the VMEM budget; (2) MXU rows
    M = nb*H near >= 256 where the batch allows; (3) >= 2 grid steps whenever
    N >= 2 (v7x has 2 TensorCores; >= 2 steps also enables cross-step DMA
    double-buffering), and >= 4 steps when that still leaves M >= 256.
    """
    fixed = _deblock_vmem_bytes(0, H, L)
    per_nb = _deblock_vmem_bytes(1, H, L) - fixed
    nb_vmem = max(1, (_VMEM_BUDGET - fixed) // max(per_nb, 1))
    nb_mxu = max(1, -(-256 // H))                   # ceil(256 / H)
    nb = int(min(N, nb_vmem, nb_mxu))
    if N >= 2:
        cap = max(1, N // 2)                        # guarantee >= 2 grid steps
        if N >= 4 and (N // 4) * H >= 256:
            cap = N // 4                            # >= 4 steps, still M >= 256
        nb = min(nb, cap)
    n_pad = (-N) % nb                               # pad batch instead of shrinking nb
    return nb, n_pad


# ------------------------------ entry points --------------------------------


def deblock_forward_nhwc(x_nhwc, params, eps=1e-5):
    """Channel-minor entry point: (N, H, W, C) f32 -> (N, H, W, C) f32."""
    N, H, W, C = x_nhwc.shape
    L = W * C
    if L % 128 != 0:
        # TODO(synk): pad C (zero extra output channels / zero BN scale) so
        #             W*C is a multiple of 128; otherwise stores get masked.
        raise ValueError(f"W*C={L} must be a multiple of 128 for lane-dense layout")

    x = x_nhwc.reshape(N, H, L)

    w1 = _fused_conv_rhs(params["conv1_w"], W)
    w2 = _fused_conv_rhs(params["conv2_w"], W)
    sb1 = _fold_bn(params["conv1_b"], params["bn1_gamma"], params["bn1_beta"],
                   params["bn1_mean"], params["bn1_var"], W, eps)
    sb2 = _fold_bn(params["conv2_b"], params["bn2_gamma"], params["bn2_beta"],
                   params["bn2_mean"], params["bn2_var"], W, eps)

    nb, n_pad = _pick_batch_block(N, H, L)
    if n_pad:
        x = jnp.concatenate([x, jnp.zeros((n_pad, H, L), x.dtype)], axis=0)
    Np = N + n_pad

    vmem_limit = int(min(max(2 * _deblock_vmem_bytes(nb, H, L), 16 << 20), 40 << 20))

    out = pl.pallas_call(
        partial(_deblock_kernel, nb=nb, H=H, L=L),
        out_shape=jax.ShapeDtypeStruct((Np, H, L), x_nhwc.dtype),
        grid_spec=pltpu.PrefetchScalarGridSpec(
            num_scalar_prefetch=0,
            grid=(Np // nb,),
            in_specs=[
                pl.BlockSpec((nb, H, L), lambda n: (n, 0, 0)),   # activations
                pl.BlockSpec((3, L, L), lambda n: (0, 0, 0)),    # conv1 RHS (grid-invariant)
                pl.BlockSpec((3, L, L), lambda n: (0, 0, 0)),    # conv2 RHS (grid-invariant)
                pl.BlockSpec((2, L), lambda n: (0, 0)),          # BN1 scale/bias
                pl.BlockSpec((2, L), lambda n: (0, 0)),          # BN2 scale/bias
            ],
            out_specs=pl.BlockSpec((nb, H, L), lambda n: (n, 0, 0)),
        ),
        compiler_params=pltpu.CompilerParams(
            dimension_semantics=("parallel",),
            vmem_limit_bytes=vmem_limit),
    )(x, w1, w2, sb1, sb2)

    if n_pad:
        out = out[:N]
    return out.reshape(N, H, W, C)


def deblock_forward(x_nchw, params, eps=1e-5):
    """PyTorch-layout (N, C, H, W) adapter around the channel-minor kernel."""
    x_nhwc = jnp.transpose(x_nchw, (0, 2, 3, 1))
    return jnp.transpose(deblock_forward_nhwc(x_nhwc, params, eps), (0, 3, 1, 2))


# ------------------------------- reference ----------------------------------


def deblock_reference(x, params, eps=1e-5):
    """Plain-JAX f32 reference (NCHW) for correctness checking."""
    def conv(h, w, b):
        y = jax.lax.conv_general_dilated(
            h, w, window_strides=(1, 1), padding=((1, 1), (1, 1)),
            dimension_numbers=("NCHW", "OIHW", "NCHW"))
        return y + b[None, :, None, None]

    def bn(h, g, be, m, v):
        return ((h - m[None, :, None, None])
                / jnp.sqrt(v[None, :, None, None] + eps)
                * g[None, :, None, None] + be[None, :, None, None])

    y = jax.nn.relu(bn(conv(x, params["conv1_w"], params["conv1_b"]),
                       params["bn1_gamma"], params["bn1_beta"],
                       params["bn1_mean"], params["bn1_var"]))
    y = jax.nn.relu(bn(conv(y, params["conv2_w"], params["conv2_b"]),
                       params["bn2_gamma"], params["bn2_beta"],
                       params["bn2_mean"], params["bn2_var"]))
    return y + x


def make_params(key, C):
    ks = jax.random.split(key, 10)
    scale = 0.1
    return {
        "conv1_w": scale * jax.random.normal(ks[0], (C, C, 3, 3), jnp.float32),
        "conv1_b": scale * jax.random.normal(ks[1], (C,), jnp.float32),
        "conv2_w": scale * jax.random.normal(ks[2], (C, C, 3, 3), jnp.float32),
        "conv2_b": scale * jax.random.normal(ks[3], (C,), jnp.float32),
        "bn1_gamma": 1.0 + scale * jax.random.normal(ks[4], (C,), jnp.float32),
        "bn1_beta": scale * jax.random.normal(ks[5], (C,), jnp.float32),
        "bn1_mean": scale * jax.random.normal(ks[6], (C,), jnp.float32),
        "bn1_var": 1.0 + 0.1 * jnp.abs(jax.random.normal(ks[7], (C,), jnp.float32)),
        "bn2_gamma": 1.0 + scale * jax.random.normal(ks[8], (C,), jnp.float32),
        "bn2_beta": scale * jax.random.normal(ks[9], (C,), jnp.float32),
        "bn2_mean": jnp.zeros((C,), jnp.float32),
        "bn2_var": jnp.ones((C,), jnp.float32),
    }


if __name__ == "__main__":
    key = jax.random.PRNGKey(0)
    kx, kp = jax.random.split(key)

    N, C, H, W = 2, 16, 16, 16          # matches DeBlock(in_channels=16); W*C=256
    x_nchw = jax.random.normal(kx, (N, C, H, W), jnp.float32)
    params = make_params(kp, C)

    # Primary (channel-minor) path: no layout transposes around the kernel.
    x_nhwc = jnp.transpose(x_nchw, (0, 2, 3, 1))
    out_nhwc = jax.block_until_ready(deblock_forward_nhwc(x_nhwc, params))

    ref_nhwc = jnp.transpose(
        jax.block_until_ready(deblock_reference(x_nchw, params)), (0, 2, 3, 1))

    assert out_nhwc.shape == x_nhwc.shape and out_nhwc.dtype == x_nhwc.dtype
    err = float(jnp.max(jnp.abs(out_nhwc - ref_nhwc)))
    # Documented tolerance: MXU operands are bf16 with f32 accumulation
    # (MXU-native on v5e/v6e/v7x); observed deviation vs the f32 reference at
    # these magnitudes is ~1e-2.
    assert err < 5e-2, f"max abs error vs reference: {err}"
    print("KERNEL_OK")
</pallas_src>

<mosaic_0001>
module attributes {stable_mosaic.version = 11 : i64} {
  func.func @_deblock_kernel(%arg0: i32, %arg1: memref<1x16x256xf32, #tpu.memory_space<vmem>>, %arg2: memref<3x256x256xbf16, #tpu.memory_space<vmem>>, %arg3: memref<3x256x256xbf16, #tpu.memory_space<vmem>>, %arg4: memref<2x256xf32, #tpu.memory_space<vmem>>, %arg5: memref<2x256xf32, #tpu.memory_space<vmem>>, %arg6: memref<1x16x256xf32, #tpu.memory_space<vmem>>) attributes {dimension_semantics = [#tpu.dimension_semantics<parallel>], iteration_bounds = array<i64: 2>, scalar_prefetch = 0 : i64, scratch_operands = 0 : i64, tpu.core_type = #tpu.core_type<tc>, window_params = [{transform_indices = @transform_0, window_bounds = array<i64: 1, 16, 256>}, {pipeline_mode = #tpu.pipeline_mode<synchronous>, transform_indices = @transform_1, window_bounds = array<i64: 3, 256, 256>}, {pipeline_mode = #tpu.pipeline_mode<synchronous>, transform_indices = @transform_2, window_bounds = array<i64: 3, 256, 256>}, {pipeline_mode = #tpu.pipeline_mode<synchronous>, transform_indices = @transform_3, window_bounds = array<i64: 2, 256>}, {pipeline_mode = #tpu.pipeline_mode<synchronous>, transform_indices = @transform_4, window_bounds = array<i64: 2, 256>}, {transform_indices = @transform_5, window_bounds = array<i64: 1, 16, 256>}]} {
    %c0 = arith.constant 0 : index
    %c0_0 = arith.constant 0 : index
    %0 = vector.load %arg4[%c0, %c0_0] : memref<2x256xf32, #tpu.memory_space<vmem>>, vector<1x256xf32>
    %c1 = arith.constant 1 : index
    %c0_1 = arith.constant 0 : index
    %1 = vector.load %arg4[%c1, %c0_1] : memref<2x256xf32, #tpu.memory_space<vmem>>, vector<1x256xf32>
    %c0_2 = arith.constant 0 : index
    %c0_3 = arith.constant 0 : index
    %2 = vector.load %arg5[%c0_2, %c0_3] : memref<2x256xf32, #tpu.memory_space<vmem>>, vector<1x256xf32>
    %c1_4 = arith.constant 1 : index
    %c0_5 = arith.constant 0 : index
    %3 = vector.load %arg5[%c1_4, %c0_5] : memref<2x256xf32, #tpu.memory_space<vmem>>, vector<1x256xf32>
    %c0_6 = arith.constant 0 : index
    %c0_7 = arith.constant 0 : index
    %c0_8 = arith.constant 0 : index
    %4 = vector.load %arg1[%c0_6, %c0_7, %c0_8] : memref<1x16x256xf32, #tpu.memory_space<vmem>>, vector<1x16x256xf32>
    %5 = arith.truncf %4 : vector<1x16x256xf32> to vector<1x16x256xbf16>
    %cst = arith.constant 0.000000e+00 : bf16
    %6 = vector.broadcast %cst : bf16 to vector<1x1x256xbf16>
    %7 = vector.extract_strided_slice %5 {offsets = [0, 0, 0], sizes = [1, 15, 256], strides = [1, 1, 1]} : vector<1x16x256xbf16> to vector<1x15x256xbf16>
    %8 = tpu.concatenate %6, %7 in 1 : vector<1x1x256xbf16>, vector<1x15x256xbf16> -> vector<1x16x256xbf16>
    %9 = vector.shape_cast %8 : vector<1x16x256xbf16> to vector<16x256xbf16>
    %10 = vector.extract_strided_slice %5 {offsets = [0, 1, 0], sizes = [1, 15, 256], strides = [1, 1, 1]} : vector<1x16x256xbf16> to vector<1x15x256xbf16>
    %11 = tpu.concatenate %10, %6 in 1 : vector<1x15x256xbf16>, vector<1x1x256xbf16> -> vector<1x16x256xbf16>
    %12 = vector.shape_cast %11 : vector<1x16x256xbf16> to vector<16x256xbf16>
    %c0_9 = arith.constant 0 : index
    %c0_10 = arith.constant 0 : index
    %c0_11 = arith.constant 0 : index
    %13 = vector.load %arg2[%c0_9, %c0_10, %c0_11] : memref<3x256x256xbf16, #tpu.memory_space<vmem>>, vector<1x256x256xbf16>
    %14 = vector.shape_cast %13 : vector<1x256x256xbf16> to vector<256x256xbf16>
    %cst_12 = arith.constant dense<0.000000e+00> : vector<16x256xf32>
    %15 = tpu.matmul %9, %14, %cst_12 {dimension_numbers = #tpu.dot_dimension_numbers<[1], [0], [0], [1], [0, 0, 1, 1], [], []>} : vector<16x256xbf16>, vector<256x256xbf16>, vector<16x256xf32> -> vector<16x256xf32>
    %16 = vector.shape_cast %5 : vector<1x16x256xbf16> to vector<16x256xbf16>
    %c1_13 = arith.constant 1 : index
    %c0_14 = arith.constant 0 : index
    %c0_15 = arith.constant 0 : index
    %17 = vector.load %arg2[%c1_13, %c0_14, %c0_15] : memref<3x256x256xbf16, #tpu.memory_space<vmem>>, vector<1x256x256xbf16>
    %18 = vector.shape_cast %17 : vector<1x256x256xbf16> to vector<256x256xbf16>
    %cst_16 = arith.constant dense<0.000000e+00> : vector<16x256xf32>
    %19 = tpu.matmul %16, %18, %cst_16 {dimension_numbers = #tpu.dot_dimension_numbers<[1], [0], [0], [1], [0, 0, 1, 1], [], []>} : vector<16x256xbf16>, vector<256x256xbf16>, vector<16x256xf32> -> vector<16x256xf32>
    %20 = arith.addf %15, %19 : vector<16x256xf32>
    %c2 = arith.constant 2 : index
    %c0_17 = arith.constant 0 : index
    %c0_18 = arith.constant 0 : index
    %21 = vector.load %arg2[%c2, %c0_17, %c0_18] : memref<3x256x256xbf16, #tpu.memory_space<vmem>>, vector<1x256x256xbf16>
    %22 = vector.shape_cast %21 : vector<1x256x256xbf16> to vector<256x256xbf16>
    %cst_19 = arith.constant dense<0.000000e+00> : vector<16x256xf32>
    %23 = tpu.matmul %12, %22, %cst_19 {dimension_numbers = #tpu.dot_dimension_numbers<[1], [0], [0], [1], [0, 0, 1, 1], [], []>} : vector<16x256xbf16>, vector<256x256xbf16>, vector<16x256xf32> -> vector<16x256xf32>
    %24 = arith.addf %20, %23 : vector<16x256xf32>
    %25 = vector.broadcast %0 : vector<1x256xf32> to vector<16x256xf32>
    %26 = arith.mulf %24, %25 : vector<16x256xf32>
    %27 = vector.broadcast %1 : vector<1x256xf32> to vector<16x256xf32>
    %28 = arith.addf %26, %27 : vector<16x256xf32>
    %cst_20 = arith.constant 0.000000e+00 : f32
    %29 = vector.broadcast %cst_20 : f32 to vector<16x256xf32>
    %30 = arith.maximumf %28, %29 : vector<16x256xf32>
    %31 = arith.truncf %30 : vector<16x256xf32> to vector<16x256xbf16>
    %32 = vector.shape_cast %31 : vector<16x256xbf16> to vector<1x16x256xbf16>
    %cst_21 = arith.constant 0.000000e+00 : bf16
    %33 = vector.broadcast %cst_21 : bf16 to vector<1x1x256xbf16>
    %34 = vector.extract_strided_slice %32 {offsets = [0, 0, 0], sizes = [1, 15, 256], strides = [1, 1, 1]} : vector<1x16x256xbf16> to vector<1x15x256xbf16>
    %35 = tpu.concatenate %33, %34 in 1 : vector<1x1x256xbf16>, vector<1x15x256xbf16> -> vector<1x16x256xbf16>
    %36 = vector.shape_cast %35 : vector<1x16x256xbf16> to vector<16x256xbf16>
    %37 = vector.extract_strided_slice %32 {offsets = [0, 1, 0], sizes = [1, 15, 256], strides = [1, 1, 1]} : vector<1x16x256xbf16> to vector<1x15x256xbf16>
    %38 = tpu.concatenate %37, %33 in 1 : vector<1x15x256xbf16>, vector<1x1x256xbf16> -> vector<1x16x256xbf16>
    %39 = vector.shape_cast %38 : vector<1x16x256xbf16> to vector<16x256xbf16>
    %c0_22 = arith.constant 0 : index
    %c0_23 = arith.constant 0 : index
    %c0_24 = arith.constant 0 : index
    %40 = vector.load %arg3[%c0_22, %c0_23, %c0_24] : memref<3x256x256xbf16, #tpu.memory_space<vmem>>, vector<1x256x256xbf16>
    %41 = vector.shape_cast %40 : vector<1x256x256xbf16> to vector<256x256xbf16>
    %cst_25 = arith.constant dense<0.000000e+00> : vector<16x256xf32>
    %42 = tpu.matmul %36, %41, %cst_25 {dimension_numbers = #tpu.dot_dimension_numbers<[1], [0], [0], [1], [0, 0, 1, 1], [], []>} : vector<16x256xbf16>, vector<256x256xbf16>, vector<16x256xf32> -> vector<16x256xf32>
    %43 = vector.shape_cast %32 : vector<1x16x256xbf16> to vector<16x256xbf16>
    %c1_26 = arith.constant 1 : index
    %c0_27 = arith.constant 0 : index
    %c0_28 = arith.constant 0 : index
    %44 = vector.load %arg3[%c1_26, %c0_27, %c0_28] : memref<3x256x256xbf16, #tpu.memory_space<vmem>>, vector<1x256x256xbf16>
    %45 = vector.shape_cast %44 : vector<1x256x256xbf16> to vector<256x256xbf16>
    %cst_29 = arith.constant dense<0.000000e+00> : vector<16x256xf32>
    %46 = tpu.matmul %43, %45, %cst_29 {dimension_numbers = #tpu.dot_dimension_numbers<[1], [0], [0], [1], [0, 0, 1, 1], [], []>} : vector<16x256xbf16>, vector<256x256xbf16>, vector<16x256xf32> -> vector<16x256xf32>
    %47 = arith.addf %42, %46 : vector<16x256xf32>
    %c2_30 = arith.constant 2 : index
    %c0_31 = arith.constant 0 : index
    %c0_32 = arith.constant 0 : index
    %48 = vector.load %arg3[%c2_30, %c0_31, %c0_32] : memref<3x256x256xbf16, #tpu.memory_space<vmem>>, vector<1x256x256xbf16>
    %49 = vector.shape_cast %48 : vector<1x256x256xbf16> to vector<256x256xbf16>
    %cst_33 = arith.constant dense<0.000000e+00> : vector<16x256xf32>
    %50 = tpu.matmul %39, %49, %cst_33 {dimension_numbers = #tpu.dot_dimension_numbers<[1], [0], [0], [1], [0, 0, 1, 1], [], []>} : vector<16x256xbf16>, vector<256x256xbf16>, vector<16x256xf32> -> vector<16x256xf32>
    %51 = arith.addf %47, %50 : vector<16x256xf32>
    %52 = vector.broadcast %2 : vector<1x256xf32> to vector<16x256xf32>
    %53 = arith.mulf %51, %52 : vector<16x256xf32>
    %54 = vector.broadcast %3 : vector<1x256xf32> to vector<16x256xf32>
    %55 = arith.addf %53, %54 : vector<16x256xf32>
    %cst_34 = arith.constant 0.000000e+00 : f32
    %56 = vector.broadcast %cst_34 : f32 to vector<16x256xf32>
    %57 = arith.maximumf %55, %56 : vector<16x256xf32>
    %58 = vector.shape_cast %57 : vector<16x256xf32> to vector<1x16x256xf32>
    %c0_35 = arith.constant 0 : index
    %c0_36 = arith.constant 0 : index
    %c0_37 = arith.constant 0 : index
    %59 = vector.load %arg1[%c0_35, %c0_36, %c0_37] : memref<1x16x256xf32, #tpu.memory_space<vmem>>, vector<1x16x256xf32>
    %60 = arith.addf %58, %59 : vector<1x16x256xf32>
    %c0_38 = arith.constant 0 : index
    %c0_39 = arith.constant 0 : index
    %c0_40 = arith.constant 0 : index
    %61 = vector.load %arg6[%c0_38, %c0_39, %c0_40] : memref<1x16x256xf32, #tpu.memory_space<vmem>>, vector<1x16x256xf32>
    tpu.vector_store %arg6[%c0_38, %c0_39, %c0_40], %60 {strides = array<i32>} : memref<1x16x256xf32, #tpu.memory_space<vmem>>, vector<1x16x256xf32>,
    return
  }
  func.func @transform_0(%arg0: i32) -> (i32, i32, i32) {
    %c0_i32 = arith.constant 0 : i32
    %c0_i32_0 = arith.constant 0 : i32
    %c0_i32_1 = arith.constant 0 : i32
    return %arg0, %c0_i32, %c0_i32_0 : i32, i32, i32
  }
  func.func @transform_1(%arg0: i32) -> (i32, i32, i32) {
    %c0_i32 = arith.constant 0 : i32
    %c0_i32_0 = arith.constant 0 : i32
    %c0_i32_1 = arith.constant 0 : i32
    %c0_i32_2 = arith.constant 0 : i32
    return %c0_i32, %c0_i32_0, %c0_i32_1 : i32, i32, i32
  }
  func.func @transform_2(%arg0: i32) -> (i32, i32, i32) {
    %c0_i32 = arith.constant 0 : i32
    %c0_i32_0 = arith.constant 0 : i32
    %c0_i32_1 = arith.constant 0 : i32
    %c0_i32_2 = arith.constant 0 : i32
    return %c0_i32, %c0_i32_0, %c0_i32_1 : i32, i32, i32
  }
  func.func @transform_3(%arg0: i32) -> (i32, i32) {
    %c0_i32 = arith.constant 0 : i32
    %c0_i32_0 = arith.constant 0 : i32
    %c0_i32_1 = arith.constant 0 : i32
    return %c0_i32, %c0_i32_0 : i32, i32
  }
  func.func @transform_4(%arg0: i32) -> (i32, i32) {
    %c0_i32 = arith.constant 0 : i32
    %c0_i32_0 = arith.constant 0 : i32
    %c0_i32_1 = arith.constant 0 : i32
    return %c0_i32, %c0_i32_0 : i32, i32
  }
  func.func @transform_5(%arg0: i32) -> (i32, i32, i32) {
    %c0_i32 = arith.constant 0 : i32
    %c0_i32_0 = arith.constant 0 : i32
    %c0_i32_1 = arith.constant 0 : i32
    return %arg0, %c0_i32, %c0_i32_0 : i32, i32, i32
  }
}

</mosaic_0001>

<llo_original>
// kernel: tpu_custom_call.1
$region0: #{tpu_custom_call.1}
  #allocation0 [shape = 'u32[]', space=smem, size = 0x4, offset = 0x4, fixed_abs, tag = 'smem constant byte address 0x4 - core index']
  #allocation1 [shape = 'u32[144,128]{1,0:T(1,128)}', space=vmem, size = 0x12000, scoped, tag = 'internal scratch']
  %s0 = inlined_call_operand.hbm [shape: f32[2,16,256], index: 0, kind: input, shape index: {}]
  %s1 = inlined_call_operand.hbm [shape: bf16[3,256,256], index: 1, kind: input, shape index: {}]
  %s2 = inlined_call_operand.hbm [shape: bf16[3,256,256], index: 2, kind: input, shape index: {}]
  %s3 = inlined_call_operand.vmem [shape: f32[2,256], index: 3, kind: input, shape index: {}]
  %s4 = inlined_call_operand.hbm [shape: f32[2,256], index: 4, kind: input, shape index: {}]
  %s5 = inlined_call_operand.hbm [shape: f32[2,16,256], index: 5, kind: output, shape index: {}]
  %s6 = sld [smem:[#allocation0]]
  $region69: #{tpu_custom_call.1} parent=0
    _
  %s8 = ssub.s32 1, %s6
  %s9 = scalar_select 0, %s8, %s6
  $region1: #{tpu_custom_call.1} parent=0
    #allocation2 [shape = 'u8[32768]{0}', space=vmem, size = 0x8000, scoped, tag = 'input window, operand 0']
    #allocation3 [shape = 's32[2]{0}', space=sflag, size = 0x8, scoped, tag = 'scoped memory for tpu_custom_call.1']
    #allocation4 [shape = 's32[2]{0}', space=sflag, size = 0x8, scoped, tag = 'scoped memory for tpu_custom_call.1']
    #allocation5 [shape = 'u8[393216]{0}', space=vmem, size = 0x60000, scoped, tag = 'input window, operand 1, single buffered']
    #allocation6 [shape = 's32[1]{0}', space=sflag, size = 0x4, scoped, tag = 'scoped memory for tpu_custom_call.1']
    #allocation7 [shape = 'u8[393216]{0}', space=vmem, size = 0x60000, scoped, tag = 'input window, operand 2, single buffered']
    #allocation8 [shape = 'u8[2048]{0}', space=vmem, size = 0x800, scoped, tag = 'input window, operand 4, single buffered']
    #allocation9 [shape = 's32[1]{0}', space=sflag, size = 0x4, scoped, tag = 'scoped memory for tpu_custom_call.1']
    #allocation10 [shape = 'u8[32768]{0}', space=vmem, size = 0x8000, scoped, tag = 'output window, operand 0']
    %10 = vsyncpa [#allocation3], 0
    %s11 = scalar_lea.sflag [#allocation3], 1
    %12 = vsyncpa %s11, 0
    %13 = vsyncpa [#allocation6], 0
    %14 = vsyncpa [#allocation9], 0
    %15 = vsyncpa [#allocation4], 0
    %s16 = scalar_lea.sflag [#allocation4], 1
    %17 = vsyncpa %s16, 0
    loop: start=0, step=1, limit=4
    $region2: #{tpu_custom_call.1} parent=1 // loop_pre_header
      _
    $region3: #{tpu_custom_call.1} parent=1 // loop_header
      %s19 = sphi 0, %s23
      %p20 = scmp.ge.s32.totalorder %s19, 4
      %s29 = sphi 0, %s31
      %s32 = sphi 0, %s29
      %s33 = sphi 0, %s32
      %s49 = sphi 0, %s33
      %s53 = sphi 0, %s53
      %s55 = sphi 0, %s53
      %s56 = sphi 0, %s55
      %s70 = sphi 0, %s56
      %s74 = sphi 0, %s74
      %s76 = sphi 0, %s74
      %s77 = sphi 0, %s76
      %s91 = sphi 0, %s77
      %s95 = sphi 0, %s95
      %s97 = sphi 0, %s95
      %s98 = sphi 0, %s97
      %s112 = sphi 0, %s98
      %s116 = sphi 0, %s116
      %s118 = sphi 0, %s116
      %s119 = sphi 0, %s118
      %s133 = sphi 0, %s119
      %s139 = sphi 0, %s141
      %s142 = sphi 0, %s139
      %s143 = sphi 0, %s142
      %s159 = sphi 0, %s143
    $region4: #{tpu_custom_call.1} parent=1 // loop_header_branch
      %22 = sbr.rel (%p20) target = $region8
    $region5: #{tpu_custom_call.1} parent=1 // loop_body
      %s24 = ssub.s32 %s19, 1
      %s25 = ssub.s32 %s19, 2
      %s26 = sadd.s32 %s19, 1
      %s27 = ssub.s32 %s19, %s26
      %p28 = scmp.eq.s32.totalorder %s27, 0
      %s30 = sadd.s32 %s29, 1
      %s31 = scalar_select %p28, %s29, %s30
      %p34 = pneg %p28
      %p35 = scmp.eq.s32.totalorder %s19, 1
      %p36 = por %p34, %p35
      %p37 = scmp.ne.s32.totalorder %s29, %s32
      %p38 = scmp.eq.s32.totalorder %s19, 0
      %p39 = por %p37, %p38
      %p40 = scmp.ne.s32.totalorder %s29, %s32
      %p41 = scmp.eq.s32.totalorder %s24, 1
      %p42 = por %p40, %p41
      %p43 = scmp.ne.s32.totalorder %s32, %s33
      %p44 = scmp.eq.s32.totalorder %s24, 0
      %p45 = por %p43, %p44
      %p46 = scmp.ne.s32.totalorder %s32, %s33
      %p47 = scmp.eq.s32.totalorder %s25, 1
      %p48 = por %p46, %p47
      %p50 = scmp.ne.s32.totalorder %s33, %s49
      %p51 = scmp.eq.s32.totalorder %s25, 0
      %p52 = por %p50, %p51
      %s54 = sadd.s32 %s53, 1
      %p57 = scmp.eq.s32.totalorder %s19, 1
      %p58 = scmp.ne.s32.totalorder %s53, %s55
      %p59 = scmp.eq.s32.totalorder %s19, 0
      %p60 = por %p58, %p59
      %p61 = scmp.ne.s32.totalorder %s53, %s55
      %p62 = scmp.eq.s32.totalorder %s24, 1
      %p63 = por %p61, %p62
      %p64 = scmp.ne.s32.totalorder %s55, %s56
      %p65 = scmp.eq.s32.totalorder %s24, 0
      %p66 = por %p64, %p65
      %p67 = scmp.ne.s32.totalorder %s55, %s56
      %p68 = scmp.eq.s32.totalorder %s25, 1
      %p69 = por %p67, %p68
      %p71 = scmp.ne.s32.totalorder %s56, %s70
      %p72 = scmp.eq.s32.totalorder %s25, 0
      %p73 = por %p71, %p72
      %s75 = sadd.s32 %s74, 1
      %p78 = scmp.eq.s32.totalorder %s19, 1
      %p79 = scmp.ne.s32.totalorder %s74, %s76
      %p80 = scmp.eq.s32.totalorder %s19, 0
      %p81 = por %p79, %p80
      %p82 = scmp.ne.s32.totalorder %s74, %s76
      %p83 = scmp.eq.s32.totalorder %s24, 1
      %p84 = por %p82, %p83
      %p85 = scmp.ne.s32.totalorder %s76, %s77
      %p86 = scmp.eq.s32.totalorder %s24, 0
      %p87 = por %p85, %p86
      %p88 = scmp.ne.s32.totalorder %s76, %s77
      %p89 = scmp.eq.s32.totalorder %s25, 1
      %p90 = por %p88, %p89
      %p92 = scmp.ne.s32.totalorder %s77, %s91
      %p93 = scmp.eq.s32.totalorder %s25, 0
      %p94 = por %p92, %p93
      %s96 = sadd.s32 %s95, 1
      %p99 = scmp.eq.s32.totalorder %s19, 1
      %p100 = scmp.ne.s32.totalorder %s95, %s97
      %p101 = scmp.eq.s32.totalorder %s19, 0
      %p102 = por %p100, %p101
      %p103 = scmp.ne.s32.totalorder %s95, %s97
      %p104 = scmp.eq.s32.totalorder %s24, 1
      %p105 = por %p103, %p104
      %p106 = scmp.ne.s32.totalorder %s97, %s98
      %p107 = scmp.eq.s32.totalorder %s24, 0
      %p108 = por %p106, %p107
      %p109 = scmp.ne.s32.totalorder %s97, %s98
      %p110 = scmp.eq.s32.totalorder %s25, 1
      %p111 = por %p109, %p110
      %p113 = scmp.ne.s32.totalorder %s98, %s112
      %p114 = scmp.eq.s32.totalorder %s25, 0
      %p115 = por %p113, %p114
      %s117 = sadd.s32 %s116, 1
      %p120 = scmp.eq.s32.totalorder %s19, 1
      %p121 = scmp.ne.s32.totalorder %s116, %s118
      %p122 = scmp.eq.s32.totalorder %s19, 0
      %p123 = por %p121, %p122
      %p124 = scmp.ne.s32.totalorder %s116, %s118
      %p125 = scmp.eq.s32.totalorder %s24, 1
      %p126 = por %p124, %p125
      %p127 = scmp.ne.s32.totalorder %s118, %s119
      %p128 = scmp.eq.s32.totalorder %s24, 0
      %p129 = por %p127, %p128
      %p130 = scmp.ne.s32.totalorder %s118, %s119
      %p131 = scmp.eq.s32.totalorder %s25, 1
      %p132 = por %p130, %p131
      %p134 = scmp.ne.s32.totalorder %s119, %s133
      %p135 = scmp.eq.s32.totalorder %s25, 0
      %p136 = por %p134, %p135
      %s137 = ssub.s32 %s19, %s26
      %p138 = scmp.eq.s32.totalorder %s137, 0
      %s140 = sadd.s32 %s139, 1
      %s141 = scalar_select %p138, %s139, %s140
      %p144 = pneg %p138
      %p145 = scmp.eq.s32.totalorder %s19, 1
      %p146 = por %p144, %p145
      %p147 = scmp.ne.s32.totalorder %s139, %s142
      %p148 = scmp.eq.s32.totalorder %s19, 0
      %p149 = por %p147, %p148
      %p150 = scmp.ne.s32.totalorder %s139, %s142
      %p151 = scmp.eq.s32.totalorder %s24, 1
      %p152 = por %p150, %p151
      %p153 = scmp.ne.s32.totalorder %s142, %s143
      %p154 = scmp.eq.s32.totalorder %s24, 0
      %p155 = por %p153, %p154
      %p156 = scmp.ne.s32.totalorder %s142, %s143
      %p157 = scmp.eq.s32.totalorder %s25, 1
      %p158 = por %p156, %p157
      %p160 = scmp.ne.s32.totalorder %s143, %s159
      %p161 = scmp.eq.s32.totalorder %s25, 0
      %p162 = por %p160, %p161
      %p163 = scmp.le.s32.totalorder 1, %s19
      %p164 = scmp.lt.s32.totalorder %s19, 3
      %p165 = pnand %p163, %p164
      %p166 = pneg %p165
      // Predicated region
      $region9: #{tpu_custom_call.1} parent=5 // pred_check
        _
      $region10: #{tpu_custom_call.1} parent=5 // pred_check_branch
        %168 = sbr.rel (%p165) target = $region12
      $region11: #{tpu_custom_call.1} parent=5 // pred_region
        %s169 = ssub.s32 %s19, 1
        // Predicated region
        $region13: #{tpu_custom_call.1} parent=11 // pred_check
          %p170 = pneg %p66
        $region14: #{tpu_custom_call.1} parent=11 // pred_check_branch
          %172 = sbr.rel (%p170) target = $region16
        $region15: #{tpu_custom_call.1} parent=11 // pred_region
          %s174 = ssub.s32 12288, 12288
          %175 = vsyncadd [#allocation6], %s174
          %s176 = sshll.u32 [#allocation5], 4
          %s177 = int_to_ptr.vmem [resolvable:$true] %s176
          %182 = dma.hbm_to_vmem [thread:$0]  %s1, 12288, %s177, [#allocation6], 128, 128, 8
        $region16: #{tpu_custom_call.1} parent=11 // pred_fallthru
          _
        // Predicated region
        $region17: #{tpu_custom_call.1} parent=11 // pred_check
          %p183 = pneg %p87
        $region18: #{tpu_custom_call.1} parent=11 // pred_check_branch
          %185 = sbr.rel (%p183) target = $region20
        $region19: #{tpu_custom_call.1} parent=11 // pred_region
          %s187 = ssub.s32 12288, 12288
          %188 = vsyncadd [#allocation6], %s187
          %s189 = sshll.u32 [#allocation7], 4
          %s190 = int_to_ptr.vmem [resolvable:$true] %s189
          %195 = dma.hbm_to_vmem [thread:$0]  %s2, 12288, %s190, [#allocation6], 128, 128, 8
        $region20: #{tpu_custom_call.1} parent=11 // pred_fallthru
          _
        // Predicated region
        $region21: #{tpu_custom_call.1} parent=11 // pred_check
          %p196 = pneg %p108
        $region22: #{tpu_custom_call.1} parent=11 // pred_check_branch
          %198 = sbr.rel (%p196) target = $region24
        $region23: #{tpu_custom_call.1} parent=11 // pred_region
          _
        $region24: #{tpu_custom_call.1} parent=11 // pred_fallthru
          _
        // Predicated region
        $region25: #{tpu_custom_call.1} parent=11 // pred_check
          %p199 = pneg %p129
        $region26: #{tpu_custom_call.1} parent=11 // pred_check_branch
          %201 = sbr.rel (%p199) target = $region28
        $region27: #{tpu_custom_call.1} parent=11 // pred_region
          %s203 = ssub.s32 64, 64
          %204 = vsyncadd [#allocation9], %s203
          %s206 = sshll.u32 [#allocation8], 4
          %s207 = int_to_ptr.vmem [resolvable:$true] %s206
          %209 = dma.hbm_to_vmem [thread:$0]  %s4, 64, %s207, [#allocation9]
        $region28: #{tpu_custom_call.1} parent=11 // pred_fallthru
          _
      $region12: #{tpu_custom_call.1} parent=5 // pred_fallthru
        _
      %p210 = scmp.lt.s32.totalorder %s19, 2
      // Predicated region
      $region29: #{tpu_custom_call.1} parent=5 // pred_check
        %p211 = pneg %p210
      $region30: #{tpu_custom_call.1} parent=5 // pred_check_branch
        %213 = sbr.rel (%p211) target = $region32
      $region31: #{tpu_custom_call.1} parent=5 // pred_region
        // Predicated region
        $region33: #{tpu_custom_call.1} parent=31 // pred_check
          %p214 = pneg %p39
        $region34: #{tpu_custom_call.1} parent=31 // pred_check_branch
          %216 = sbr.rel (%p214) target = $region36
        $region35: #{tpu_custom_call.1} parent=31 // pred_region
          %s217 = sand.u32 %s29, 1
          %s218 = scalar_lea.sflag [#allocation3], %s217
          %s219 = sand.u32 %s29, 1
          %s220 = smul.addr %s219, 32
          %s221 = scalar_lea.vmem [#allocation2], %s220
          %s223 = ssub.s32 512, 512
          %224 = vsyncadd %s218, %s223
          %s225 = smul.addr %s19, 4
          %s226 = smul.addr %s225, 128
          %s227 = scalar_lea.hbm %s0, %s226
          %s228 = sshll.u32 %s221, 4
          %s229 = int_to_ptr.vmem [resolvable:$true] %s228
          %234 = dma.hbm_to_vmem [thread:$0]  %s227, 512, %s229, %s218, 256, 256, 16
        $region36: #{tpu_custom_call.1} parent=31 // pred_fallthru
          _
      $region32: #{tpu_custom_call.1} parent=5 // pred_fallthru
        _
      %p235 = scmp.le.s32.totalorder 1, %s19
      %p236 = scmp.lt.s32.totalorder %s19, 3
      %p237 = pnand %p235, %p236
      %p238 = pneg %p237
      // Predicated region
      $region37: #{tpu_custom_call.1} parent=5 // pred_check
        _
      $region38: #{tpu_custom_call.1} parent=5 // pred_check_branch
        %240 = sbr.rel (%p237) target = $region40
      $region39: #{tpu_custom_call.1} parent=5 // pred_region
        %s241 = ssub.s32 %s19, 1
        %s242 = sand.u32 %s32, 1
        %s243 = scalar_lea.sflag [#allocation3], %s242
        %s244 = sand.u32 %s32, 1
        %s245 = smul.addr %s244, 32
        %s246 = scalar_lea.vmem [#allocation2], %s245
        // Predicated region
        $region41: #{tpu_custom_call.1} parent=39 // pred_check
          %p247 = pneg %p45
        $region42: #{tpu_custom_call.1} parent=39 // pred_check_branch
          %249 = sbr.rel (%p247) target = $region44
        $region43: #{tpu_custom_call.1} parent=39 // pred_region
          %250 = dma.done %s243, 512
        $region44: #{tpu_custom_call.1} parent=39 // pred_fallthru
          _
        // Predicated region
        $region45: #{tpu_custom_call.1} parent=39 // pred_check
          %p251 = pneg %p66
        $region46: #{tpu_custom_call.1} parent=39 // pred_check_branch
          %253 = sbr.rel (%p251) target = $region48
        $region47: #{tpu_custom_call.1} parent=39 // pred_region
          %254 = dma.done [#allocation6], 12288
        $region48: #{tpu_custom_call.1} parent=39 // pred_fallthru
          _
        // Predicated region
        $region49: #{tpu_custom_call.1} parent=39 // pred_check
          %p255 = pneg %p87
        $region50: #{tpu_custom_call.1} parent=39 // pred_check_branch
          %257 = sbr.rel (%p255) target = $region52
        $region51: #{tpu_custom_call.1} parent=39 // pred_region
          %258 = dma.done [#allocation6], 12288
        $region52: #{tpu_custom_call.1} parent=39 // pred_fallthru
          _
        // Predicated region
        $region53: #{tpu_custom_call.1} parent=39 // pred_check
          %p259 = pneg %p129
        $region54: #{tpu_custom_call.1} parent=39 // pred_check_branch
          %261 = sbr.rel (%p259) target = $region56
        $region55: #{tpu_custom_call.1} parent=39 // pred_region
          %262 = dma.done [#allocation9], 64
        $region56: #{tpu_custom_call.1} parent=39 // pred_fallthru
          _
        %s263 = sand.u32 %s32, 1
        %s264 = scalar_lea.sflag [#allocation3], %s263
        %s265 = sand.u32 %s32, 1
        %s266 = smul.addr %s265, 32
        %s267 = scalar_lea.vmem [#allocation2], %s266
        %p268 = pneg %p45
        %p269 = pneg %p42
        %p270 = pneg %p66
        %p271 = pneg %p63
        %p272 = pneg %p87
        %p273 = pneg %p84
        %p274 = pneg %p108
        %p275 = pneg %p105
        %p276 = pneg %p129
        %p277 = pneg %p126
        %p278 = pneg %p155
        %p279 = pneg %p152
        %s280 = sand.u32 %s142, 1
        %s281 = scalar_lea.sflag [#allocation4], %s280
        %s282 = sand.u32 %s142, 1
        %s283 = smul.addr %s282, 32
        %s284 = scalar_lea.vmem [#allocation10], %s283
        %v286 = vld [vmem:[%s3] ss:$2 sm:$0x3]
        %s287 = scalar_lea.vmem %s3, 1
        %v288 = vld [vmem:[%s287] ss:$2 sm:$0x3]
        %v289 = vld [vmem:[#allocation8] ss:$2 sm:$0x3]
        %s290 = scalar_lea.vmem [#allocation8], 1
        %v291 = vld [vmem:[%s290] ss:$2 sm:$0x3]
        %v292 = vld [vmem:[%s246] sm:$0xff]
        %v293 = vld [vmem:[%s246 + $0x8] sm:$0xff]
        %v294 = vld [vmem:[%s246 + $0x10] sm:$0xff]
        %v295 = vld [vmem:[%s246 + $0x18] sm:$0xff]
        %v296 = vpack.c.bf16 %v294, %v292
        %v297 = vpack.c.bf16 %v295, %v293
        %v299 = vshrl.u32 %v296, 16
        %v301 = vrot.slane %v299, 7
        %v302 = vshll.u32 %v296, 16
        %v304 = vor.u32 %v301, %v302
        %v306 = vshrl.u32 %v297, 16
        %v308 = vrot.slane %v306, 7
        %v309 = vshll.u32 %v297, 16
        %v311 = vor.u32 %v308, %v309
        %vm314 = vcmask 1040384
        %vm315 = vsmask.f32 256
        %vm316 = vmand %vm314, %vm315
        %v317 = vsel %vm316, 0, %v304
        %v318 = vsel %vm316, 0, %v311
        %v319 = vrot.slane %v302, 1
        %v320 = vor.u32 %v299, %v319
        %v321 = vrot.slane %v309, 1
        %v322 = vor.u32 %v306, %v321
        %vm325 = vcmask 1047552
        %vm326 = vsmask.f32 7424
        %vm327 = vmand %vm325, %vm326
        %v328 = vsel %vm327, %v320, 0
        %v329 = vsel %vm327, %v322, 0
        %v330 = vld [vmem:[#allocation5] sm:$0xff]
        %v331 = vld [vmem:[#allocation5 + $0x8] sm:$0xff]
        %v332 = vld [vmem:[#allocation5 + $0x10] sm:$0xff]
        %v333 = vld [vmem:[#allocation5 + $0x18] sm:$0xff]
        %v334 = vld [vmem:[#allocation5 + $0x20] sm:$0xff]
        %v335 = vld [vmem:[#allocation5 + $0x28] sm:$0xff]
        %v336 = vld [vmem:[#allocation5 + $0x30] sm:$0xff]
        %v337 = vld [vmem:[#allocation5 + $0x38] sm:$0xff]
        %v338 = vld [vmem:[#allocation5 + $0x40] sm:$0xff]
        %v339 = vld [vmem:[#allocation5 + $0x48] sm:$0xff]
        %v340 = vld [vmem:[#allocation5 + $0x50] sm:$0xff]
        %v341 = vld [vmem:[#allocation5 + $0x58] sm:$0xff]
        %v342 = vld [vmem:[#allocation5 + $0x60] sm:$0xff]
        %v343 = vld [vmem:[#allocation5 + $0x68] sm:$0xff]
        %v344 = vld [vmem:[#allocation5 + $0x70] sm:$0xff]
        %v345 = vld [vmem:[#allocation5 + $0x78] sm:$0xff]
        %v346 = vld [vmem:[#allocation5 + $0x80] sm:$0xff]
        %v347 = vld [vmem:[#allocation5 + $0x88] sm:$0xff]
        %v348 = vld [vmem:[#allocation5 + $0x90] sm:$0xff]
        %v349 = vld [vmem:[#allocation5 + $0x98] sm:$0xff]
        %v350 = vld [vmem:[#allocation5 + $0xa0] sm:$0xff]
        %v351 = vld [vmem:[#allocation5 + $0xa8] sm:$0xff]
        %v352 = vld [vmem:[#allocation5 + $0xb0] sm:$0xff]
        %v353 = vld [vmem:[#allocation5 + $0xb8] sm:$0xff]
        %v354 = vld [vmem:[#allocation5 + $0xc0] sm:$0xff]
        %v355 = vld [vmem:[#allocation5 + $0xc8] sm:$0xff]
        %v356 = vld [vmem:[#allocation5 + $0xd0] sm:$0xff]
        %v357 = vld [vmem:[#allocation5 + $0xd8] sm:$0xff]
        %v358 = vld [vmem:[#allocation5 + $0xe0] sm:$0xff]
        %v359 = vld [vmem:[#allocation5 + $0xe8] sm:$0xff]
        %v360 = vld [vmem:[#allocation5 + $0xf0] sm:$0xff]
        %v361 = vld [vmem:[#allocation5 + $0xf8] sm:$0xff]
        %s362 = scalar_lea.vmem [#allocation5], 256
        %v363 = vld [vmem:[%s362] sm:$0xff]
        %v364 = vld [vmem:[%s362 + $0x8] sm:$0xff]
        %v365 = vld [vmem:[%s362 + $0x10] sm:$0xff]
        %v366 = vld [vmem:[%s362 + $0x18] sm:$0xff]
        %v367 = vld [vmem:[%s362 + $0x20] sm:$0xff]
        %v368 = vld [vmem:[%s362 + $0x28] sm:$0xff]
        %v369 = vld [vmem:[%s362 + $0x30] sm:$0xff]
        %v370 = vld [vmem:[%s362 + $0x38] sm:$0xff]
        %v371 = vld [vmem:[%s362 + $0x40] sm:$0xff]
        %v372 = vld [vmem:[%s362 + $0x48] sm:$0xff]
        %v373 = vld [vmem:[%s362 + $0x50] sm:$0xff]
        %v374 = vld [vmem:[%s362 + $0x58] sm:$0xff]
        %v375 = vld [vmem:[%s362 + $0x60] sm:$0xff]
        %v376 = vld [vmem:[%s362 + $0x68] sm:$0xff]
        %v377 = vld [vmem:[%s362 + $0x70] sm:$0xff]
        %v378 = vld [vmem:[%s362 + $0x78] sm:$0xff]
        %v379 = vld [vmem:[%s362 + $0x80] sm:$0xff]
        %v380 = vld [vmem:[%s362 + $0x88] sm:$0xff]
        %v381 = vld [vmem:[%s362 + $0x90] sm:$0xff]
        %v382 = vld [vmem:[%s362 + $0x98] sm:$0xff]
        %v383 = vld [vmem:[%s362 + $0xa0] sm:$0xff]
        %v384 = vld [vmem:[%s362 + $0xa8] sm:$0xff]
        %v385 = vld [vmem:[%s362 + $0xb0] sm:$0xff]
        %v386 = vld [vmem:[%s362 + $0xb8] sm:$0xff]
        %v387 = vld [vmem:[%s362 + $0xc0] sm:$0xff]
        %v388 = vld [vmem:[%s362 + $0xc8] sm:$0xff]
        %v389 = vld [vmem:[%s362 + $0xd0] sm:$0xff]
        %v390 = vld [vmem:[%s362 + $0xd8] sm:$0xff]
        %v391 = vld [vmem:[%s362 + $0xe0] sm:$0xff]
        %v392 = vld [vmem:[%s362 + $0xe8] sm:$0xff]
        %v393 = vld [vmem:[%s362 + $0xf0] sm:$0xff]
        %v394 = vld [vmem:[%s362 + $0xf8] sm:$0xff]
        %v427 = vunpack.c.l.b16 %v363
        %v428 = vunpack.c.h.b16 %v363
        %v429 = vunpack.c.l.b16 %v364
        %v430 = vunpack.c.h.b16 %v364
        %v431 = vunpack.c.l.b16 %v365
        %v432 = vunpack.c.h.b16 %v365
        %v433 = vunpack.c.l.b16 %v366
        %v434 = vunpack.c.h.b16 %v366
        %v435 = vunpack.c.l.b16 %v367
        %v436 = vunpack.c.h.b16 %v367
        %v437 = vunpack.c.l.b16 %v368
        %v438 = vunpack.c.h.b16 %v368
        %v439 = vunpack.c.l.b16 %v369
        %v440 = vunpack.c.h.b16 %v369
        %v441 = vunpack.c.l.b16 %v370
        %v442 = vunpack.c.h.b16 %v370
        %v443 = vunpack.c.l.b16 %v371
        %v444 = vunpack.c.h.b16 %v371
        %v445 = vunpack.c.l.b16 %v372
        %v446 = vunpack.c.h.b16 %v372
        %v447 = vunpack.c.l.b16 %v373
        %v448 = vunpack.c.h.b16 %v373
        %v449 = vunpack.c.l.b16 %v374
        %v450 = vunpack.c.h.b16 %v374
        %v451 = vunpack.c.l.b16 %v375
        %v452 = vunpack.c.h.b16 %v375
        %v453 = vunpack.c.l.b16 %v376
        %v454 = vunpack.c.h.b16 %v376
        %v455 = vunpack.c.l.b16 %v377
        %v456 = vunpack.c.h.b16 %v377
        %v457 = vunpack.c.l.b16 %v378
        %v458 = vunpack.c.h.b16 %v378
        %v459 = vunpack.c.l.b16 %v379
        %v460 = vunpack.c.h.b16 %v379
        %v461 = vunpack.c.l.b16 %v380
        %v462 = vunpack.c.h.b16 %v380
        %v463 = vunpack.c.l.b16 %v381
        %v464 = vunpack.c.h.b16 %v381
        %v465 = vunpack.c.l.b16 %v382
        %v466 = vunpack.c.h.b16 %v382
        %v467 = vunpack.c.l.b16 %v383
        %v468 = vunpack.c.h.b16 %v383
        %v469 = vunpack.c.l.b16 %v384
        %v470 = vunpack.c.h.b16 %v384
        %v471 = vunpack.c.l.b16 %v385
        %v472 = vunpack.c.h.b16 %v385
        %v473 = vunpack.c.l.b16 %v386
        %v474 = vunpack.c.h.b16 %v386
        %v475 = vunpack.c.l.b16 %v387
        %v476 = vunpack.c.h.b16 %v387
        %v477 = vunpack.c.l.b16 %v388
        %v478 = vunpack.c.h.b16 %v388
        %v479 = vunpack.c.l.b16 %v389
        %v480 = vunpack.c.h.b16 %v389
        %v481 = vunpack.c.l.b16 %v390
        %v482 = vunpack.c.h.b16 %v390
        %v483 = vunpack.c.l.b16 %v391
        %v484 = vunpack.c.h.b16 %v391
        %v485 = vunpack.c.l.b16 %v392
        %v486 = vunpack.c.h.b16 %v392
        %v487 = vunpack.c.l.b16 %v393
        %v488 = vunpack.c.h.b16 %v393
        %v489 = vunpack.c.l.b16 %v394
        %v490 = vunpack.c.h.b16 %v394
        %v491 = vpack.c.b16 %v429, %v427
        %v492 = vpack.c.b16 %v430, %v428
        %v493 = vpack.c.b16 %v433, %v431
        %v494 = vpack.c.b16 %v434, %v432
        %v495 = vpack.c.b16 %v437, %v435
        %v496 = vpack.c.b16 %v438, %v436
        %v497 = vpack.c.b16 %v441, %v439
        %v498 = vpack.c.b16 %v442, %v440
        %v499 = vpack.c.b16 %v445, %v443
        %v500 = vpack.c.b16 %v446, %v444
        %v501 = vpack.c.b16 %v449, %v447
        %v502 = vpack.c.b16 %v450, %v448
        %v503 = vpack.c.b16 %v453, %v451
        %v504 = vpack.c.b16 %v454, %v452
        %v505 = vpack.c.b16 %v457, %v455
        %v506 = vpack.c.b16 %v458, %v456
        %v507 = vpack.c.b16 %v461, %v459
        %v508 = vpack.c.b16 %v462, %v460
        %v509 = vpack.c.b16 %v465, %v463
        %v510 = vpack.c.b16 %v466, %v464
        %v511 = vpack.c.b16 %v469, %v467
        %v512 = vpack.c.b16 %v470, %v468
        %v513 = vpack.c.b16 %v473, %v471
        %v514 = vpack.c.b16 %v474, %v472
        %v515 = vpack.c.b16 %v477, %v475
        %v516 = vpack.c.b16 %v478, %v476
        %v517 = vpack.c.b16 %v481, %v479
        %v518 = vpack.c.b16 %v482, %v480
        %v519 = vpack.c.b16 %v485, %v483
        %v520 = vpack.c.b16 %v486, %v484
        %v521 = vpack.c.b16 %v489, %v487
        %v522 = vpack.c.b16 %v490, %v488
        %555 = vmatprep.subr.bf16.mxu0 %v506
        %556 = vmatpush1.bf16.msra.mxu0 %v505
        %557 = vmatprep.subr.bf16.mxu0 %v504
        %558 = vmatpush1.bf16.msra.mxu0 %v503
        %559 = vmatprep.subr.bf16.mxu0 %v502
        %560 = vmatpush1.bf16.msra.mxu0 %v501
        %561 = vmatprep.subr.bf16.mxu0 %v500
        %562 = vmatpush1.bf16.msra.mxu0 %v499
        %563 = vmatprep.subr.bf16.mxu0 %v498
        %564 = vmatpush1.bf16.msra.mxu0 %v497
        %565 = vmatprep.subr.bf16.mxu0 %v496
        %566 = vmatpush1.bf16.msra.mxu0 %v495
        %567 = vmatprep.subr.bf16.mxu0 %v494
        %568 = vmatpush1.bf16.msra.mxu0 %v493
        %569 = vmatprep.subr.bf16.mxu0 %v492
        %570 = vmatpush1.bf16.msra.mxu0 %v491
        %571 = vmatprep.subr.bf16.mxu0 %v522
        %572 = vmatpush2.bf16.msra.mxu0 %v521
        %573 = vmatprep.subr.bf16.mxu0 %v520
        %574 = vmatpush2.bf16.msra.mxu0 %v519
        %575 = vmatprep.subr.bf16.mxu0 %v518
        %576 = vmatpush2.bf16.msra.mxu0 %v517
        %577 = vmatprep.subr.bf16.mxu0 %v516
        %578 = vmatpush2.bf16.msra.mxu0 %v515
        %579 = vmatprep.subr.bf16.mxu0 %v514
        %580 = vmatpush2.bf16.msra.mxu0 %v513
        %581 = vmatprep.subr.bf16.mxu0 %v512
        %582 = vmatpush2.bf16.msra.mxu0 %v511
        %583 = vmatprep.subr.bf16.mxu0 %v510
        %584 = vmatpush2.bf16.msra.mxu0 %v509
        %585 = vmatprep.subr.bf16.mxu0 %v508
        %586 = vmatpush2.bf16.msra.mxu0 %v507
        %587 = vmatprep.mubr.bf16.mxu0 %v297
        %588 = vmatmul.mubr.bf16.gmra.mxu0 %v296
        %v589 = vpop.f32.mrf.mxu0
        %v590 = vadd.f32 0.0, %v589
        %v591 = vpop.f32.mrf.mxu0
        %v592 = vadd.f32 0.0, %v591
        %v593 = vpop.f32.mrf.mxu0
        %v594 = vadd.f32 0.0, %v593
        %v595 = vpop.f32.mrf.mxu0
        %v596 = vadd.f32 0.0, %v595
        %597 = vdwg.mxu0
        %v630 = vunpack.c.l.b16 %v330
        %v631 = vunpack.c.h.b16 %v330
        %v632 = vunpack.c.l.b16 %v331
        %v633 = vunpack.c.h.b16 %v331
        %v634 = vunpack.c.l.b16 %v332
        %v635 = vunpack.c.h.b16 %v332
        %v636 = vunpack.c.l.b16 %v333
        %v637 = vunpack.c.h.b16 %v333
        %v638 = vunpack.c.l.b16 %v334
        %v639 = vunpack.c.h.b16 %v334
        %v640 = vunpack.c.l.b16 %v335
        %v641 = vunpack.c.h.b16 %v335
        %v642 = vunpack.c.l.b16 %v336
        %v643 = vunpack.c.h.b16 %v336
        %v644 = vunpack.c.l.b16 %v337
        %v645 = vunpack.c.h.b16 %v337
        %v646 = vunpack.c.l.b16 %v338
        %v647 = vunpack.c.h.b16 %v338
        %v648 = vunpack.c.l.b16 %v339
        %v649 = vunpack.c.h.b16 %v339
        %v650 = vunpack.c.l.b16 %v340
        %v651 = vunpack.c.h.b16 %v340
        %v652 = vunpack.c.l.b16 %v341
        %v653 = vunpack.c.h.b16 %v341
        %v654 = vunpack.c.l.b16 %v342
        %v655 = vunpack.c.h.b16 %v342
        %v656 = vunpack.c.l.b16 %v343
        %v657 = vunpack.c.h.b16 %v343
        %v658 = vunpack.c.l.b16 %v344
        %v659 = vunpack.c.h.b16 %v344
        %v660 = vunpack.c.l.b16 %v345
        %v661 = vunpack.c.h.b16 %v345
        %v662 = vunpack.c.l.b16 %v346
        %v663 = vunpack.c.h.b16 %v346
        %v664 = vunpack.c.l.b16 %v347
        %v665 = vunpack.c.h.b16 %v347
        %v666 = vunpack.c.l.b16 %v348
        %v667 = vunpack.c.h.b16 %v348
        %v668 = vunpack.c.l.b16 %v349
        %v669 = vunpack.c.h.b16 %v349
        %v670 = vunpack.c.l.b16 %v350
        %v671 = vunpack.c.h.b16 %v350
        %v672 = vunpack.c.l.b16 %v351
        %v673 = vunpack.c.h.b16 %v351
        %v674 = vunpack.c.l.b16 %v352
        %v675 = vunpack.c.h.b16 %v352
        %v676 = vunpack.c.l.b16 %v353
        %v677 = vunpack.c.h.b16 %v353
        %v678 = vunpack.c.l.b16 %v354
        %v679 = vunpack.c.h.b16 %v354
        %v680 = vunpack.c.l.b16 %v355
        %v681 = vunpack.c.h.b16 %v355
        %v682 = vunpack.c.l.b16 %v356
        %v683 = vunpack.c.h.b16 %v356
        %v684 = vunpack.c.l.b16 %v357
        %v685 = vunpack.c.h.b16 %v357
        %v686 = vunpack.c.l.b16 %v358
        %v687 = vunpack.c.h.b16 %v358
        %v688 = vunpack.c.l.b16 %v359
        %v689 = vunpack.c.h.b16 %v359
        %v690 = vunpack.c.l.b16 %v360
        %v691 = vunpack.c.h.b16 %v360
        %v692 = vunpack.c.l.b16 %v361
        %v693 = vunpack.c.h.b16 %v361
        %v694 = vpack.c.b16 %v632, %v630
        %v695 = vpack.c.b16 %v633, %v631
        %v696 = vpack.c.b16 %v636, %v634
        %v697 = vpack.c.b16 %v637, %v635
        %v698 = vpack.c.b16 %v640, %v638
        %v699 = vpack.c.b16 %v641, %v639
        %v700 = vpack.c.b16 %v644, %v642
        %v701 = vpack.c.b16 %v645, %v643
        %v702 = vpack.c.b16 %v648, %v646
        %v703 = vpack.c.b16 %v649, %v647
        %v704 = vpack.c.b16 %v652, %v650
        %v705 = vpack.c.b16 %v653, %v651
        %v706 = vpack.c.b16 %v656, %v654
        %v707 = vpack.c.b16 %v657, %v655
        %v708 = vpack.c.b16 %v660, %v658
        %v709 = vpack.c.b16 %v661, %v659
        %v710 = vpack.c.b16 %v664, %v662
        %v711 = vpack.c.b16 %v665, %v663
        %v712 = vpack.c.b16 %v668, %v666
        %v713 = vpack.c.b16 %v669, %v667
        %v714 = vpack.c.b16 %v672, %v670
        %v715 = vpack.c.b16 %v673, %v671
        %v716 = vpack.c.b16 %v676, %v674
        %v717 = vpack.c.b16 %v677, %v675
        %v718 = vpack.c.b16 %v680, %v678
        %v719 = vpack.c.b16 %v681, %v679
        %v720 = vpack.c.b16 %v684, %v682
        %v721 = vpack.c.b16 %v685, %v683
        %v722 = vpack.c.b16 %v688, %v686
        %v723 = vpack.c.b16 %v689, %v687
        %v724 = vpack.c.b16 %v692, %v690
        %v725 = vpack.c.b16 %v693, %v691
        %758 = vmatprep.subr.bf16.mxu0 %v709
        %759 = vmatpush1.bf16.msra.mxu0 %v708
        %760 = vmatprep.subr.bf16.mxu0 %v707
        %761 = vmatpush1.bf16.msra.mxu0 %v706
        %762 = vmatprep.subr.bf16.mxu0 %v705
        %763 = vmatpush1.bf16.msra.mxu0 %v704
        %764 = vmatprep.subr.bf16.mxu0 %v703
        %765 = vmatpush1.bf16.msra.mxu0 %v702
        %766 = vmatprep.subr.bf16.mxu0 %v701
        %767 = vmatpush1.bf16.msra.mxu0 %v700
        %768 = vmatprep.subr.bf16.mxu0 %v699
        %769 = vmatpush1.bf16.msra.mxu0 %v698
        %770 = vmatprep.subr.bf16.mxu0 %v697
        %771 = vmatpush1.bf16.msra.mxu0 %v696
        %772 = vmatprep.subr.bf16.mxu0 %v695
        %773 = vmatpush1.bf16.msra.mxu0 %v694
        %774 = vmatprep.subr.bf16.mxu0 %v725
        %775 = vmatpush2.bf16.msra.mxu0 %v724
        %776 = vmatprep.subr.bf16.mxu0 %v723
        %777 = vmatpush2.bf16.msra.mxu0 %v722
        %778 = vmatprep.subr.bf16.mxu0 %v721
        %779 = vmatpush2.bf16.msra.mxu0 %v720
        %780 = vmatprep.subr.bf16.mxu0 %v719
        %781 = vmatpush2.bf16.msra.mxu0 %v718
        %782 = vmatprep.subr.bf16.mxu0 %v717
        %783 = vmatpush2.bf16.msra.mxu0 %v716
        %784 = vmatprep.subr.bf16.mxu0 %v715
        %785 = vmatpush2.bf16.msra.mxu0 %v714
        %786 = vmatprep.subr.bf16.mxu0 %v713
        %787 = vmatpush2.bf16.msra.mxu0 %v712
        %788 = vmatprep.subr.bf16.mxu0 %v711
        %789 = vmatpush2.bf16.msra.mxu0 %v710
        %790 = vmatprep.mubr.bf16.mxu0 %v318
        %791 = vmatmul.mubr.bf16.gmra.mxu0 %v317
        %v792 = vpop.f32.mrf.mxu0
        %v793 = vadd.f32 %v590, %v792
        %v794 = vpop.f32.mrf.mxu0
        %v795 = vadd.f32 %v592, %v794
        %v796 = vpop.f32.mrf.mxu0
        %v797 = vadd.f32 %v594, %v796
        %v798 = vpop.f32.mrf.mxu0
        %v799 = vadd.f32 %v596, %v798
        %800 = vdwg.mxu0
        %s801 = scalar_lea.vmem [#allocation5], 512
        %v802 = vld [vmem:[%s801] sm:$0xff]
        %v803 = vld [vmem:[%s801 + $0x8] sm:$0xff]
        %v804 = vld [vmem:[%s801 + $0x10] sm:$0xff]
        %v805 = vld [vmem:[%s801 + $0x18] sm:$0xff]
        %v806 = vld [vmem:[%s801 + $0x20] sm:$0xff]
        %v807 = vld [vmem:[%s801 + $0x28] sm:$0xff]
        %v808 = vld [vmem:[%s801 + $0x30] sm:$0xff]
        %v809 = vld [vmem:[%s801 + $0x38] sm:$0xff]
        %v810 = vld [vmem:[%s801 + $0x40] sm:$0xff]
        %v811 = vld [vmem:[%s801 + $0x48] sm:$0xff]
        %v812 = vld [vmem:[%s801 + $0x50] sm:$0xff]
        %v813 = vld [vmem:[%s801 + $0x58] sm:$0xff]
        %v814 = vld [vmem:[%s801 + $0x60] sm:$0xff]
        %v815 = vld [vmem:[%s801 + $0x68] sm:$0xff]
        %v816 = vld [vmem:[%s801 + $0x70] sm:$0xff]
        %v817 = vld [vmem:[%s801 + $0x78] sm:$0xff]
        %v818 = vld [vmem:[%s801 + $0x80] sm:$0xff]
        %v819 = vld [vmem:[%s801 + $0x88] sm:$0xff]
        %v820 = vld [vmem:[%s801 + $0x90] sm:$0xff]
        %v821 = vld [vmem:[%s801 + $0x98] sm:$0xff]
        %v822 = vld [vmem:[%s801 + $0xa0] sm:$0xff]
        %v823 = vld [vmem:[%s801 + $0xa8] sm:$0xff]
        %v824 = vld [vmem:[%s801 + $0xb0] sm:$0xff]
        %v825 = vld [vmem:[%s801 + $0xb8] sm:$0xff]
        %v826 = vld [vmem:[%s801 + $0xc0] sm:$0xff]
        %v827 = vld [vmem:[%s801 + $0xc8] sm:$0xff]
        %v828 = vld [vmem:[%s801 + $0xd0] sm:$0xff]
        %v829 = vld [vmem:[%s801 + $0xd8] sm:$0xff]
        %v830 = vld [vmem:[%s801 + $0xe0] sm:$0xff]
        %v831 = vld [vmem:[%s801 + $0xe8] sm:$0xff]
        %v832 = vld [vmem:[%s801 + $0xf0] sm:$0xff]
        %v833 = vld [vmem:[%s801 + $0xf8] sm:$0xff]
        %v866 = vunpack.c.l.b16 %v802
        %v867 = vunpack.c.h.b16 %v802
        %v868 = vunpack.c.l.b16 %v803
        %v869 = vunpack.c.h.b16 %v803
        %v870 = vunpack.c.l.b16 %v804
        %v871 = vunpack.c.h.b16 %v804
        %v872 = vunpack.c.l.b16 %v805
        %v873 = vunpack.c.h.b16 %v805
        %v874 = vunpack.c.l.b16 %v806
        %v875 = vunpack.c.h.b16 %v806
        %v876 = vunpack.c.l.b16 %v807
        %v877 = vunpack.c.h.b16 %v807
        %v878 = vunpack.c.l.b16 %v808
        %v879 = vunpack.c.h.b16 %v808
        %v880 = vunpack.c.l.b16 %v809
        %v881 = vunpack.c.h.b16 %v809
        %v882 = vunpack.c.l.b16 %v810
        %v883 = vunpack.c.h.b16 %v810
        %v884 = vunpack.c.l.b16 %v811
        %v885 = vunpack.c.h.b16 %v811
        %v886 = vunpack.c.l.b16 %v812
        %v887 = vunpack.c.h.b16 %v812
        %v888 = vunpack.c.l.b16 %v813
        %v889 = vunpack.c.h.b16 %v813
        %v890 = vunpack.c.l.b16 %v814
        %v891 = vunpack.c.h.b16 %v814
        %v892 = vunpack.c.l.b16 %v815
        %v893 = vunpack.c.h.b16 %v815
        %v894 = vunpack.c.l.b16 %v816
        %v895 = vunpack.c.h.b16 %v816
        %v896 = vunpack.c.l.b16 %v817
        %v897 = vunpack.c.h.b16 %v817
        %v898 = vunpack.c.l.b16 %v818
        %v899 = vunpack.c.h.b16 %v818
        %v900 = vunpack.c.l.b16 %v819
        %v901 = vunpack.c.h.b16 %v819
        %v902 = vunpack.c.l.b16 %v820
        %v903 = vunpack.c.h.b16 %v820
        %v904 = vunpack.c.l.b16 %v821
        %v905 = vunpack.c.h.b16 %v821
        %v906 = vunpack.c.l.b16 %v822
        %v907 = vunpack.c.h.b16 %v822
        %v908 = vunpack.c.l.b16 %v823
        %v909 = vunpack.c.h.b16 %v823
        %v910 = vunpack.c.l.b16 %v824
        %v911 = vunpack.c.h.b16 %v824
        %v912 = vunpack.c.l.b16 %v825
        %v913 = vunpack.c.h.b16 %v825
        %v914 = vunpack.c.l.b16 %v826
        %v915 = vunpack.c.h.b16 %v826
        %v916 = vunpack.c.l.b16 %v827
        %v917 = vunpack.c.h.b16 %v827
        %v918 = vunpack.c.l.b16 %v828
        %v919 = vunpack.c.h.b16 %v828
        %v920 = vunpack.c.l.b16 %v829
        %v921 = vunpack.c.h.b16 %v829
        %v922 = vunpack.c.l.b16 %v830
        %v923 = vunpack.c.h.b16 %v830
        %v924 = vunpack.c.l.b16 %v831
        %v925 = vunpack.c.h.b16 %v831
        %v926 = vunpack.c.l.b16 %v832
        %v927 = vunpack.c.h.b16 %v832
        %v928 = vunpack.c.l.b16 %v833
        %v929 = vunpack.c.h.b16 %v833
        %v930 = vpack.c.b16 %v868, %v866
        %v931 = vpack.c.b16 %v869, %v867
        %v932 = vpack.c.b16 %v872, %v870
        %v933 = vpack.c.b16 %v873, %v871
        %v934 = vpack.c.b16 %v876, %v874
        %v935 = vpack.c.b16 %v877, %v875
        %v936 = vpack.c.b16 %v880, %v878
        %v937 = vpack.c.b16 %v881, %v879
        %v938 = vpack.c.b16 %v884, %v882
        %v939 = vpack.c.b16 %v885, %v883
        %v940 = vpack.c.b16 %v888, %v886
        %v941 = vpack.c.b16 %v889, %v887
        %v942 = vpack.c.b16 %v892, %v890
        %v943 = vpack.c.b16 %v893, %v891
        %v944 = vpack.c.b16 %v896, %v894
        %v945 = vpack.c.b16 %v897, %v895
        %v946 = vpack.c.b16 %v900, %v898
        %v947 = vpack.c.b16 %v901, %v899
        %v948 = vpack.c.b16 %v904, %v902
        %v949 = vpack.c.b16 %v905, %v903
        %v950 = vpack.c.b16 %v908, %v906
        %v951 = vpack.c.b16 %v909, %v907
        %v952 = vpack.c.b16 %v912, %v910
        %v953 = vpack.c.b16 %v913, %v911
        %v954 = vpack.c.b16 %v916, %v914
        %v955 = vpack.c.b16 %v917, %v915
        %v956 = vpack.c.b16 %v920, %v918
        %v957 = vpack.c.b16 %v921, %v919
        %v958 = vpack.c.b16 %v924, %v922
        %v959 = vpack.c.b16 %v925, %v923
        %v960 = vpack.c.b16 %v928, %v926
        %v961 = vpack.c.b16 %v929, %v927
        %994 = vmatprep.subr.bf16.mxu0 %v945
        %995 = vmatpush1.bf16.msra.mxu0 %v944
        %996 = vmatprep.subr.bf16.mxu0 %v943
        %997 = vmatpush1.bf16.msra.mxu0 %v942
        %998 = vmatprep.subr.bf16.mxu0 %v941
        %999 = vmatpush1.bf16.msra.mxu0 %v940
        %1000 = vmatprep.subr.bf16.mxu0 %v939
        %1001 = vmatpush1.bf16.msra.mxu0 %v938
        %1002 = vmatprep.subr.bf16.mxu0 %v937
        %1003 = vmatpush1.bf16.msra.mxu0 %v936
        %1004 = vmatprep.subr.bf16.mxu0 %v935
        %1005 = vmatpush1.bf16.msra.mxu0 %v934
        %1006 = vmatprep.subr.bf16.mxu0 %v933
        %1007 = vmatpush1.bf16.msra.mxu0 %v932
        %1008 = vmatprep.subr.bf16.mxu0 %v931
        %1009 = vmatpush1.bf16.msra.mxu0 %v930
        %1010 = vmatprep.subr.bf16.mxu0 %v961
        %1011 = vmatpush2.bf16.msra.mxu0 %v960
        %1012 = vmatprep.subr.bf16.mxu0 %v959
        %1013 = vmatpush2.bf16.msra.mxu0 %v958
        %1014 = vmatprep.subr.bf16.mxu0 %v957
        %1015 = vmatpush2.bf16.msra.mxu0 %v956
        %1016 = vmatprep.subr.bf16.mxu0 %v955
        %1017 = vmatpush2.bf16.msra.mxu0 %v954
        %1018 = vmatprep.subr.bf16.mxu0 %v953
        %1019 = vmatpush2.bf16.msra.mxu0 %v952
        %1020 = vmatprep.subr.bf16.mxu0 %v951
        %1021 = vmatpush2.bf16.msra.mxu0 %v950
        %1022 = vmatprep.subr.bf16.mxu0 %v949
        %1023 = vmatpush2.bf16.msra.mxu0 %v948
        %1024 = vmatprep.subr.bf16.mxu0 %v947
        %1025 = vmatpush2.bf16.msra.mxu0 %v946
        %1026 = vmatprep.mubr.bf16.mxu0 %v329
        %1027 = vmatmul.mubr.bf16.gmra.mxu0 %v328
        %v1028 = vpop.f32.mrf.mxu0
        %v1029 = vadd.f32 0.0, %v1028
        %v1030 = vpop.f32.mrf.mxu0
        %v1031 = vadd.f32 0.0, %v1030
        %v1032 = vpop.f32.mrf.mxu0
        %v1033 = vadd.f32 0.0, %v1032
        %v1034 = vpop.f32.mrf.mxu0
        %v1035 = vadd.f32 0.0, %v1034
        %1036 = vdwg.mxu0
        %v1037 = vadd.f32 %v793, %v1029
        %v1038 = vadd.f32 %v795, %v1031
        %v1039 = vadd.f32 %v797, %v1033
        %v1040 = vadd.f32 %v799, %v1035
        %v1042 = vlaneseq
        %v1043 = vshrl.u32 %v1042, 7
        %v1044 = vsub.s32 0, %v1043
        %v1045 = vrot.slane %v286, %v1044
        %v1046 = vlaneseq
        %v1047 = vshrl.u32 %v1046, 7
        %v1048 = vsub.s32 1, %v1047
        %v1049 = vrot.slane %v286, %v1048
        %v1052 = vmul.f32 %v1037, %v1045
        %v1053 = vmul.f32 %v1038, %v1049
        %v1054 = vmul.f32 %v1039, %v1045
        %v1055 = vmul.f32 %v1040, %v1049
        %v1057 = vlaneseq
        %v1058 = vshrl.u32 %v1057, 7
        %v1059 = vsub.s32 0, %v1058
        %v1060 = vrot.slane %v288, %v1059
        %v1061 = vlaneseq
        %v1062 = vshrl.u32 %v1061, 7
        %v1063 = vsub.s32 1, %v1062
        %v1064 = vrot.slane %v288, %v1063
        %v1067 = vadd.f32 %v1052, %v1060
        %v1068 = vadd.f32 %v1053, %v1064
        %v1069 = vadd.f32 %v1054, %v1060
        %v1070 = vadd.f32 %v1055, %v1064
        %v1071 = vmax.f32 %v1067, 0.0
        %v1072 = vmax.f32 %v1068, 0.0
        %v1073 = vmax.f32 %v1069, 0.0
        %v1074 = vmax.f32 %v1070, 0.0
        %v1075 = vpack.c.bf16 %v1073, %v1071
        %v1076 = vpack.c.bf16 %v1074, %v1072
        %v1078 = vshrl.u32 %v1075, 16
        %v1080 = vrot.slane %v1078, 7
        %v1081 = vshll.u32 %v1075, 16
        %v1083 = vor.u32 %v1080, %v1081
        %v1085 = vshrl.u32 %v1076, 16
        %v1087 = vrot.slane %v1085, 7
        %v1088 = vshll.u32 %v1076, 16
        %v1090 = vor.u32 %v1087, %v1088
        %v1093 = vsel %vm316, 0, %v1083
        %v1094 = vsel %vm316, 0, %v1090
        %v1095 = vrot.slane %v1081, 1
        %v1096 = vor.u32 %v1078, %v1095
        %v1097 = vrot.slane %v1088, 1
        %v1098 = vor.u32 %v1085, %v1097
        %v1101 = vsel %vm327, %v1096, 0
        %v1102 = vsel %vm327, %v1098, 0
        %v1103 = vld [vmem:[#allocation7] sm:$0xff]
        %v1104 = vld [vmem:[#allocation7 + $0x8] sm:$0xff]
        %v1105 = vld [vmem:[#allocation7 + $0x10] sm:$0xff]
        %v1106 = vld [vmem:[#allocation7 + $0x18] sm:$0xff]
        %v1107 = vld [vmem:[#allocation7 + $0x20] sm:$0xff]
        %v1108 = vld [vmem:[#allocation7 + $0x28] sm:$0xff]
        %v1109 = vld [vmem:[#allocation7 + $0x30] sm:$0xff]
        %v1110 = vld [vmem:[#allocation7 + $0x38] sm:$0xff]
        %v1111 = vld [vmem:[#allocation7 + $0x40] sm:$0xff]
        %v1112 = vld [vmem:[#allocation7 + $0x48] sm:$0xff]
        %v1113 = vld [vmem:[#allocation7 + $0x50] sm:$0xff]
        %v1114 = vld [vmem:[#allocation7 + $0x58] sm:$0xff]
        %v1115 = vld [vmem:[#allocation7 + $0x60] sm:$0xff]
        %v1116 = vld [vmem:[#allocation7 + $0x68] sm:$0xff]
        %v1117 = vld [vmem:[#allocation7 + $0x70] sm:$0xff]
        %v1118 = vld [vmem:[#allocation7 + $0x78] sm:$0xff]
        %v1119 = vld [vmem:[#allocation7 + $0x80] sm:$0xff]
        %v1120 = vld [vmem:[#allocation7 + $0x88] sm:$0xff]
        %v1121 = vld [vmem:[#allocation7 + $0x90] sm:$0xff]
        %v1122 = vld [vmem:[#allocation7 + $0x98] sm:$0xff]
        %v1123 = vld [vmem:[#allocation7 + $0xa0] sm:$0xff]
        %v1124 = vld [vmem:[#allocation7 + $0xa8] sm:$0xff]
        %v1125 = vld [vmem:[#allocation7 + $0xb0] sm:$0xff]
        %v1126 = vld [vmem:[#allocation7 + $0xb8] sm:$0xff]
        %v1127 = vld [vmem:[#allocation7 + $0xc0] sm:$0xff]
        %v1128 = vld [vmem:[#allocation7 + $0xc8] sm:$0xff]
        %v1129 = vld [vmem:[#allocation7 + $0xd0] sm:$0xff]
        %v1130 = vld [vmem:[#allocation7 + $0xd8] sm:$0xff]
        %v1131 = vld [vmem:[#allocation7 + $0xe0] sm:$0xff]
        %v1132 = vld [vmem:[#allocation7 + $0xe8] sm:$0xff]
        %v1133 = vld [vmem:[#allocation7 + $0xf0] sm:$0xff]
        %v1134 = vld [vmem:[#allocation7 + $0xf8] sm:$0xff]
        %s1135 = scalar_lea.vmem [#allocation7], 256
        %v1136 = vld [vmem:[%s1135] sm:$0xff]
        %v1137 = vld [vmem:[%s1135 + $0x8] sm:$0xff]
        %v1138 = vld [vmem:[%s1135 + $0x10] sm:$0xff]
        %v1139 = vld [vmem:[%s1135 + $0x18] sm:$0xff]
        %v1140 = vld [vmem:[%s1135 + $0x20] sm:$0xff]
        %v1141 = vld [vmem:[%s1135 + $0x28] sm:$0xff]
        %v1142 = vld [vmem:[%s1135 + $0x30] sm:$0xff]
        %v1143 = vld [vmem:[%s1135 + $0x38] sm:$0xff]
        %v1144 = vld [vmem:[%s1135 + $0x40] sm:$0xff]
        %v1145 = vld [vmem:[%s1135 + $0x48] sm:$0xff]
        %v1146 = vld [vmem:[%s1135 + $0x50] sm:$0xff]
        %v1147 = vld [vmem:[%s1135 + $0x58] sm:$0xff]
        %v1148 = vld [vmem:[%s1135 + $0x60] sm:$0xff]
        %v1149 = vld [vmem:[%s1135 + $0x68] sm:$0xff]
        %v1150 = vld [vmem:[%s1135 + $0x70] sm:$0xff]
        %v1151 = vld [vmem:[%s1135 + $0x78] sm:$0xff]
        %v1152 = vld [vmem:[%s1135 + $0x80] sm:$0xff]
        %v1153 = vld [vmem:[%s1135 + $0x88] sm:$0xff]
        %v1154 = vld [vmem:[%s1135 + $0x90] sm:$0xff]
        %v1155 = vld [vmem:[%s1135 + $0x98] sm:$0xff]
        %v1156 = vld [vmem:[%s1135 + $0xa0] sm:$0xff]
        %v1157 = vld [vmem:[%s1135 + $0xa8] sm:$0xff]
        %v1158 = vld [vmem:[%s1135 + $0xb0] sm:$0xff]
        %v1159 = vld [vmem:[%s1135 + $0xb8] sm:$0xff]
        %v1160 = vld [vmem:[%s1135 + $0xc0] sm:$0xff]
        %v1161 = vld [vmem:[%s1135 + $0xc8] sm:$0xff]
        %v1162 = vld [vmem:[%s1135 + $0xd0] sm:$0xff]
        %v1163 = vld [vmem:[%s1135 + $0xd8] sm:$0xff]
        %v1164 = vld [vmem:[%s1135 + $0xe0] sm:$0xff]
        %v1165 = vld [vmem:[%s1135 + $0xe8] sm:$0xff]
        %v1166 = vld [vmem:[%s1135 + $0xf0] sm:$0xff]
        %v1167 = vld [vmem:[%s1135 + $0xf8] sm:$0xff]
        %v1200 = vunpack.c.l.b16 %v1136
        %v1201 = vunpack.c.h.b16 %v1136
        %v1202 = vunpack.c.l.b16 %v1137
        %v1203 = vunpack.c.h.b16 %v1137
        %v1204 = vunpack.c.l.b16 %v1138
        %v1205 = vunpack.c.h.b16 %v1138
        %v1206 = vunpack.c.l.b16 %v1139
        %v1207 = vunpack.c.h.b16 %v1139
        %v1208 = vunpack.c.l.b16 %v1140
        %v1209 = vunpack.c.h.b16 %v1140
        %v1210 = vunpack.c.l.b16 %v1141
        %v1211 = vunpack.c.h.b16 %v1141
        %v1212 = vunpack.c.l.b16 %v1142
        %v1213 = vunpack.c.h.b16 %v1142
        %v1214 = vunpack.c.l.b16 %v1143
        %v1215 = vunpack.c.h.b16 %v1143
        %v1216 = vunpack.c.l.b16 %v1144
        %v1217 = vunpack.c.h.b16 %v1144
        %v1218 = vunpack.c.l.b16 %v1145
        %v1219 = vunpack.c.h.b16 %v1145
        %v1220 = vunpack.c.l.b16 %v1146
        %v1221 = vunpack.c.h.b16 %v1146
        %v1222 = vunpack.c.l.b16 %v1147
        %v1223 = vunpack.c.h.b16 %v1147
        %v1224 = vunpack.c.l.b16 %v1148
        %v1225 = vunpack.c.h.b16 %v1148
        %v1226 = vunpack.c.l.b16 %v1149
        %v1227 = vunpack.c.h.b16 %v1149
        %v1228 = vunpack.c.l.b16 %v1150
        %v1229 = vunpack.c.h.b16 %v1150
        %v1230 = vunpack.c.l.b16 %v1151
        %v1231 = vunpack.c.h.b16 %v1151
        %v1232 = vunpack.c.l.b16 %v1152
        %v1233 = vunpack.c.h.b16 %v1152
        %v1234 = vunpack.c.l.b16 %v1153
        %v1235 = vunpack.c.h.b16 %v1153
        %v1236 = vunpack.c.l.b16 %v1154
        %v1237 = vunpack.c.h.b16 %v1154
        %v1238 = vunpack.c.l.b16 %v1155
        %v1239 = vunpack.c.h.b16 %v1155
        %v1240 = vunpack.c.l.b16 %v1156
        %v1241 = vunpack.c.h.b16 %v1156
        %v1242 = vunpack.c.l.b16 %v1157
        %v1243 = vunpack.c.h.b16 %v1157
        %v1244 = vunpack.c.l.b16 %v1158
        %v1245 = vunpack.c.h.b16 %v1158
        %v1246 = vunpack.c.l.b16 %v1159
        %v1247 = vunpack.c.h.b16 %v1159
        %v1248 = vunpack.c.l.b16 %v1160
        %v1249 = vunpack.c.h.b16 %v1160
        %v1250 = vunpack.c.l.b16 %v1161
        %v1251 = vunpack.c.h.b16 %v1161
        %v1252 = vunpack.c.l.b16 %v1162
        %v1253 = vunpack.c.h.b16 %v1162
        %v1254 = vunpack.c.l.b16 %v1163
        %v1255 = vunpack.c.h.b16 %v1163
        %v1256 = vunpack.c.l.b16 %v1164
        %v1257 = vunpack.c.h.b16 %v1164
        %v1258 = vunpack.c.l.b16 %v1165
        %v1259 = vunpack.c.h.b16 %v1165
        %v1260 = vunpack.c.l.b16 %v1166
        %v1261 = vunpack.c.h.b16 %v1166
        %v1262 = vunpack.c.l.b16 %v1167
        %v1263 = vunpack.c.h.b16 %v1167
        %v1264 = vpack.c.b16 %v1202, %v1200
        %v1265 = vpack.c.b16 %v1203, %v1201
        %v1266 = vpack.c.b16 %v1206, %v1204
        %v1267 = vpack.c.b16 %v1207, %v1205
        %v1268 = vpack.c.b16 %v1210, %v1208
        %v1269 = vpack.c.b16 %v1211, %v1209
        %v1270 = vpack.c.b16 %v1214, %v1212
        %v1271 = vpack.c.b16 %v1215, %v1213
        %v1272 = vpack.c.b16 %v1218, %v1216
        %v1273 = vpack.c.b16 %v1219, %v1217
        %v1274 = vpack.c.b16 %v1222, %v1220
        %v1275 = vpack.c.b16 %v1223, %v1221
        %v1276 = vpack.c.b16 %v1226, %v1224
        %v1277 = vpack.c.b16 %v1227, %v1225
        %v1278 = vpack.c.b16 %v1230, %v1228
        %v1279 = vpack.c.b16 %v1231, %v1229
        %v1280 = vpack.c.b16 %v1234, %v1232
        %v1281 = vpack.c.b16 %v1235, %v1233
        %v1282 = vpack.c.b16 %v1238, %v1236
        %v1283 = vpack.c.b16 %v1239, %v1237
        %v1284 = vpack.c.b16 %v1242, %v1240
        %v1285 = vpack.c.b16 %v1243, %v1241
        %v1286 = vpack.c.b16 %v1246, %v1244
        %v1287 = vpack.c.b16 %v1247, %v1245
        %v1288 = vpack.c.b16 %v1250, %v1248
        %v1289 = vpack.c.b16 %v1251, %v1249
        %v1290 = vpack.c.b16 %v1254, %v1252
        %v1291 = vpack.c.b16 %v1255, %v1253
        %v1292 = vpack.c.b16 %v1258, %v1256
        %v1293 = vpack.c.b16 %v1259, %v1257
        %v1294 = vpack.c.b16 %v1262, %v1260
        %v1295 = vpack.c.b16 %v1263, %v1261
        %1328 = vmatprep.subr.bf16.mxu0 %v1279
        %1329 = vmatpush1.bf16.msra.mxu0 %v1278
        %1330 = vmatprep.subr.bf16.mxu0 %v1277
        %1331 = vmatpush1.bf16.msra.mxu0 %v1276
        %1332 = vmatprep.subr.bf16.mxu0 %v1275
        %1333 = vmatpush1.bf16.msra.mxu0 %v1274
        %1334 = vmatprep.subr.bf16.mxu0 %v1273
        %1335 = vmatpush1.bf16.msra.mxu0 %v1272
        %1336 = vmatprep.subr.bf16.mxu0 %v1271
        %1337 = vmatpush1.bf16.msra.mxu0 %v1270
        %1338 = vmatprep.subr.bf16.mxu0 %v1269
        %1339 = vmatpush1.bf16.msra.mxu0 %v1268
        %1340 = vmatprep.subr.bf16.mxu0 %v1267
        %1341 = vmatpush1.bf16.msra.mxu0 %v1266
        %1342 = vmatprep.subr.bf16.mxu0 %v1265
        %1343 = vmatpush1.bf16.msra.mxu0 %v1264
        %1344 = vmatprep.subr.bf16.mxu0 %v1295
        %1345 = vmatpush2.bf16.msra.mxu0 %v1294
        %1346 = vmatprep.subr.bf16.mxu0 %v1293
        %1347 = vmatpush2.bf16.msra.mxu0 %v1292
        %1348 = vmatprep.subr.bf16.mxu0 %v1291
        %1349 = vmatpush2.bf16.msra.mxu0 %v1290
        %1350 = vmatprep.subr.bf16.mxu0 %v1289
        %1351 = vmatpush2.bf16.msra.mxu0 %v1288
        %1352 = vmatprep.subr.bf16.mxu0 %v1287
        %1353 = vmatpush2.bf16.msra.mxu0 %v1286
        %1354 = vmatprep.subr.bf16.mxu0 %v1285
        %1355 = vmatpush2.bf16.msra.mxu0 %v1284
        %1356 = vmatprep.subr.bf16.mxu0 %v1283
        %1357 = vmatpush2.bf16.msra.mxu0 %v1282
        %1358 = vmatprep.subr.bf16.mxu0 %v1281
        %1359 = vmatpush2.bf16.msra.mxu0 %v1280
        %1360 = vmatprep.mubr.bf16.mxu0 %v1076
        %1361 = vmatmul.mubr.bf16.gmra.mxu0 %v1075
        %v1362 = vpop.f32.mrf.mxu0
        %v1363 = vadd.f32 0.0, %v1362
        %v1364 = vpop.f32.mrf.mxu0
        %v1365 = vadd.f32 0.0, %v1364
        %v1366 = vpop.f32.mrf.mxu0
        %v1367 = vadd.f32 0.0, %v1366
        %v1368 = vpop.f32.mrf.mxu0
        %v1369 = vadd.f32 0.0, %v1368
        %1370 = vdwg.mxu0
        %v1403 = vunpack.c.l.b16 %v1103
        %v1404 = vunpack.c.h.b16 %v1103
        %v1405 = vunpack.c.l.b16 %v1104
        %v1406 = vunpack.c.h.b16 %v1104
        %v1407 = vunpack.c.l.b16 %v1105
        %v1408 = vunpack.c.h.b16 %v1105
        %v1409 = vunpack.c.l.b16 %v1106
        %v1410 = vunpack.c.h.b16 %v1106
        %v1411 = vunpack.c.l.b16 %v1107
        %v1412 = vunpack.c.h.b16 %v1107
        %v1413 = vunpack.c.l.b16 %v1108
        %v1414 = vunpack.c.h.b16 %v1108
        %v1415 = vunpack.c.l.b16 %v1109
        %v1416 = vunpack.c.h.b16 %v1109
        %v1417 = vunpack.c.l.b16 %v1110
        %v1418 = vunpack.c.h.b16 %v1110
        %v1419 = vunpack.c.l.b16 %v1111
        %v1420 = vunpack.c.h.b16 %v1111
        %v1421 = vunpack.c.l.b16 %v1112
        %v1422 = vunpack.c.h.b16 %v1112
        %v1423 = vunpack.c.l.b16 %v1113
        %v1424 = vunpack.c.h.b16 %v1113
        %v1425 = vunpack.c.l.b16 %v1114
        %v1426 = vunpack.c.h.b16 %v1114
        %v1427 = vunpack.c.l.b16 %v1115
        %v1428 = vunpack.c.h.b16 %v1115
        %v1429 = vunpack.c.l.b16 %v1116
        %v1430 = vunpack.c.h.b16 %v1116
        %v1431 = vunpack.c.l.b16 %v1117
        %v1432 = vunpack.c.h.b16 %v1117
        %v1433 = vunpack.c.l.b16 %v1118
        %v1434 = vunpack.c.h.b16 %v1118
        %v1435 = vunpack.c.l.b16 %v1119
        %v1436 = vunpack.c.h.b16 %v1119
        %v1437 = vunpack.c.l.b16 %v1120
        %v1438 = vunpack.c.h.b16 %v1120
        %v1439 = vunpack.c.l.b16 %v1121
        %v1440 = vunpack.c.h.b16 %v1121
        %v1441 = vunpack.c.l.b16 %v1122
        %v1442 = vunpack.c.h.b16 %v1122
        %v1443 = vunpack.c.l.b16 %v1123
        %v1444 = vunpack.c.h.b16 %v1123
        %v1445 = vunpack.c.l.b16 %v1124
        %v1446 = vunpack.c.h.b16 %v1124
        %v1447 = vunpack.c.l.b16 %v1125
        %v1448 = vunpack.c.h.b16 %v1125
        %v1449 = vunpack.c.l.b16 %v1126
        %v1450 = vunpack.c.h.b16 %v1126
        %v1451 = vunpack.c.l.b16 %v1127
        %v1452 = vunpack.c.h.b16 %v1127
        %v1453 = vunpack.c.l.b16 %v1128
        %v1454 = vunpack.c.h.b16 %v1128
        %v1455 = vunpack.c.l.b16 %v1129
        %v1456 = vunpack.c.h.b16 %v1129
        %v1457 = vunpack.c.l.b16 %v1130
        %v1458 = vunpack.c.h.b16 %v1130
        %v1459 = vunpack.c.l.b16 %v1131
        %v1460 = vunpack.c.h.b16 %v1131
        %v1461 = vunpack.c.l.b16 %v1132
        %v1462 = vunpack.c.h.b16 %v1132
        %v1463 = vunpack.c.l.b16 %v1133
        %v1464 = vunpack.c.h.b16 %v1133
        %v1465 = vunpack.c.l.b16 %v1134
        %v1466 = vunpack.c.h.b16 %v1134
        %v1467 = vpack.c.b16 %v1405, %v1403
        %v1468 = vpack.c.b16 %v1406, %v1404
        %v1469 = vpack.c.b16 %v1409, %v1407
        %v1470 = vpack.c.b16 %v1410, %v1408
        %v1471 = vpack.c.b16 %v1413, %v1411
        %v1472 = vpack.c.b16 %v1414, %v1412
        %v1473 = vpack.c.b16 %v1417, %v1415
        %v1474 = vpack.c.b16 %v1418, %v1416
        %v1475 = vpack.c.b16 %v1421, %v1419
        %v1476 = vpack.c.b16 %v1422, %v1420
        %v1477 = vpack.c.b16 %v1425, %v1423
        %v1478 = vpack.c.b16 %v1426, %v1424
        %v1479 = vpack.c.b16 %v1429, %v1427
        %v1480 = vpack.c.b16 %v1430, %v1428
        %v1481 = vpack.c.b16 %v1433, %v1431
        %v1482 = vpack.c.b16 %v1434, %v1432
        %v1483 = vpack.c.b16 %v1437, %v1435
        %v1484 = vpack.c.b16 %v1438, %v1436
        %v1485 = vpack.c.b16 %v1441, %v1439
        %v1486 = vpack.c.b16 %v1442, %v1440
        %v1487 = vpack.c.b16 %v1445, %v1443
        %v1488 = vpack.c.b16 %v1446, %v1444
        %v1489 = vpack.c.b16 %v1449, %v1447
        %v1490 = vpack.c.b16 %v1450, %v1448
        %v1491 = vpack.c.b16 %v1453, %v1451
        %v1492 = vpack.c.b16 %v1454, %v1452
        %v1493 = vpack.c.b16 %v1457, %v1455
        %v1494 = vpack.c.b16 %v1458, %v1456
        %v1495 = vpack.c.b16 %v1461, %v1459
        %v1496 = vpack.c.b16 %v1462, %v1460
        %v1497 = vpack.c.b16 %v1465, %v1463
        %v1498 = vpack.c.b16 %v1466, %v1464
        %1531 = vmatprep.subr.bf16.mxu0 %v1482
        %1532 = vmatpush1.bf16.msra.mxu0 %v1481
        %1533 = vmatprep.subr.bf16.mxu0 %v1480
        %1534 = vmatpush1.bf16.msra.mxu0 %v1479
        %1535 = vmatprep.subr.bf16.mxu0 %v1478
        %1536 = vmatpush1.bf16.msra.mxu0 %v1477
        %1537 = vmatprep.subr.bf16.mxu0 %v1476
        %1538 = vmatpush1.bf16.msra.mxu0 %v1475
        %1539 = vmatprep.subr.bf16.mxu0 %v1474
        %1540 = vmatpush1.bf16.msra.mxu0 %v1473
        %1541 = vmatprep.subr.bf16.mxu0 %v1472
        %1542 = vmatpush1.bf16.msra.mxu0 %v1471
        %1543 = vmatprep.subr.bf16.mxu0 %v1470
        %1544 = vmatpush1.bf16.msra.mxu0 %v1469
        %1545 = vmatprep.subr.bf16.mxu0 %v1468
        %1546 = vmatpush1.bf16.msra.mxu0 %v1467
        %1547 = vmatprep.subr.bf16.mxu0 %v1498
        %1548 = vmatpush2.bf16.msra.mxu0 %v1497
        %1549 = vmatprep.subr.bf16.mxu0 %v1496
        %1550 = vmatpush2.bf16.msra.mxu0 %v1495
        %1551 = vmatprep.subr.bf16.mxu0 %v1494
        %1552 = vmatpush2.bf16.msra.mxu0 %v1493
        %1553 = vmatprep.subr.bf16.mxu0 %v1492
        %1554 = vmatpush2.bf16.msra.mxu0 %v1491
        %1555 = vmatprep.subr.bf16.mxu0 %v1490
        %1556 = vmatpush2.bf16.msra.mxu0 %v1489
        %1557 = vmatprep.subr.bf16.mxu0 %v1488
        %1558 = vmatpush2.bf16.msra.mxu0 %v1487
        %1559 = vmatprep.subr.bf16.mxu0 %v1486
        %1560 = vmatpush2.bf16.msra.mxu0 %v1485
        %1561 = vmatprep.subr.bf16.mxu0 %v1484
        %1562 = vmatpush2.bf16.msra.mxu0 %v1483
        %1563 = vmatprep.mubr.bf16.mxu0 %v1094
        %1564 = vmatmul.mubr.bf16.gmra.mxu0 %v1093
        %v1565 = vpop.f32.mrf.mxu0
        %v1566 = vadd.f32 %v1363, %v1565
        %v1567 = vpop.f32.mrf.mxu0
        %v1568 = vadd.f32 %v1365, %v1567
        %v1569 = vpop.f32.mrf.mxu0
        %v1570 = vadd.f32 %v1367, %v1569
        %v1571 = vpop.f32.mrf.mxu0
        %v1572 = vadd.f32 %v1369, %v1571
        %1573 = vdwg.mxu0
        %s1574 = scalar_lea.vmem [#allocation7], 512
        %v1575 = vld [vmem:[%s1574] sm:$0xff]
        %v1576 = vld [vmem:[%s1574 + $0x8] sm:$0xff]
        %v1577 = vld [vmem:[%s1574 + $0x10] sm:$0xff]
        %v1578 = vld [vmem:[%s1574 + $0x18] sm:$0xff]
        %v1579 = vld [vmem:[%s1574 + $0x20] sm:$0xff]
        %v1580 = vld [vmem:[%s1574 + $0x28] sm:$0xff]
        %v1581 = vld [vmem:[%s1574 + $0x30] sm:$0xff]
        %v1582 = vld [vmem:[%s1574 + $0x38] sm:$0xff]
        %v1583 = vld [vmem:[%s1574 + $0x40] sm:$0xff]
        %v1584 = vld [vmem:[%s1574 + $0x48] sm:$0xff]
        %v1585 = vld [vmem:[%s1574 + $0x50] sm:$0xff]
        %v1586 = vld [vmem:[%s1574 + $0x58] sm:$0xff]
        %v1587 = vld [vmem:[%s1574 + $0x60] sm:$0xff]
        %v1588 = vld [vmem:[%s1574 + $0x68] sm:$0xff]
        %v1589 = vld [vmem:[%s1574 + $0x70] sm:$0xff]
        %v1590 = vld [vmem:[%s1574 + $0x78] sm:$0xff]
        %v1591 = vld [vmem:[%s1574 + $0x80] sm:$0xff]
        %v1592 = vld [vmem:[%s1574 + $0x88] sm:$0xff]
        %v1593 = vld [vmem:[%s1574 + $0x90] sm:$0xff]
        %v1594 = vld [vmem:[%s1574 + $0x98] sm:$0xff]
        %v1595 = vld [vmem:[%s1574 + $0xa0] sm:$0xff]
        %v1596 = vld [vmem:[%s1574 + $0xa8] sm:$0xff]
        %v1597 = vld [vmem:[%s1574 + $0xb0] sm:$0xff]
        %v1598 = vld [vmem:[%s1574 + $0xb8] sm:$0xff]
        %v1599 = vld [vmem:[%s1574 + $0xc0] sm:$0xff]
        %v1600 = vld [vmem:[%s1574 + $0xc8] sm:$0xff]
        %v1601 = vld [vmem:[%s1574 + $0xd0] sm:$0xff]
        %v1602 = vld [vmem:[%s1574 + $0xd8] sm:$0xff]
        %v1603 = vld [vmem:[%s1574 + $0xe0] sm:$0xff]
        %v1604 = vld [vmem:[%s1574 + $0xe8] sm:$0xff]
        %v1605 = vld [vmem:[%s1574 + $0xf0] sm:$0xff]
        %v1606 = vld [vmem:[%s1574 + $0xf8] sm:$0xff]
        %v1639 = vunpack.c.l.b16 %v1575
        %v1640 = vunpack.c.h.b16 %v1575
        %v1641 = vunpack.c.l.b16 %v1576
        %v1642 = vunpack.c.h.b16 %v1576
        %v1643 = vunpack.c.l.b16 %v1577
        %v1644 = vunpack.c.h.b16 %v1577
        %v1645 = vunpack.c.l.b16 %v1578
        %v1646 = vunpack.c.h.b16 %v1578
        %v1647 = vunpack.c.l.b16 %v1579
        %v1648 = vunpack.c.h.b16 %v1579
        %v1649 = vunpack.c.l.b16 %v1580
        %v1650 = vunpack.c.h.b16 %v1580
        %v1651 = vunpack.c.l.b16 %v1581
        %v1652 = vunpack.c.h.b16 %v1581
        %v1653 = vunpack.c.l.b16 %v1582
        %v1654 = vunpack.c.h.b16 %v1582
        %v1655 = vunpack.c.l.b16 %v1583
        %v1656 = vunpack.c.h.b16 %v1583
        %v1657 = vunpack.c.l.b16 %v1584
        %v1658 = vunpack.c.h.b16 %v1584
        %v1659 = vunpack.c.l.b16 %v1585
        %v1660 = vunpack.c.h.b16 %v1585
        %v1661 = vunpack.c.l.b16 %v1586
        %v1662 = vunpack.c.h.b16 %v1586
        %v1663 = vunpack.c.l.b16 %v1587
        %v1664 = vunpack.c.h.b16 %v1587
        %v1665 = vunpack.c.l.b16 %v1588
        %v1666 = vunpack.c.h.b16 %v1588
        %v1667 = vunpack.c.l.b16 %v1589
        %v1668 = vunpack.c.h.b16 %v1589
        %v1669 = vunpack.c.l.b16 %v1590
        %v1670 = vunpack.c.h.b16 %v1590
        %v1671 = vunpack.c.l.b16 %v1591
        %v1672 = vunpack.c.h.b16 %v1591
        %v1673 = vunpack.c.l.b16 %v1592
        %v1674 = vunpack.c.h.b16 %v1592
        %v1675 = vunpack.c.l.b16 %v1593
        %v1676 = vunpack.c.h.b16 %v1593
        %v1677 = vunpack.c.l.b16 %v1594
        %v1678 = vunpack.c.h.b16 %v1594
        %v1679 = vunpack.c.l.b16 %v1595
        %v1680 = vunpack.c.h.b16 %v1595
        %v1681 = vunpack.c.l.b16 %v1596
        %v1682 = vunpack.c.h.b16 %v1596
        %v1683 = vunpack.c.l.b16 %v1597
        %v1684 = vunpack.c.h.b16 %v1597
        %v1685 = vunpack.c.l.b16 %v1598
        %v1686 = vunpack.c.h.b16 %v1598
        %v1687 = vunpack.c.l.b16 %v1599
        %v1688 = vunpack.c.h.b16 %v1599
        %v1689 = vunpack.c.l.b16 %v1600
        %v1690 = vunpack.c.h.b16 %v1600
        %v1691 = vunpack.c.l.b16 %v1601
        %v1692 = vunpack.c.h.b16 %v1601
        %v1693 = vunpack.c.l.b16 %v1602
        %v1694 = vunpack.c.h.b16 %v1602
        %v1695 = vunpack.c.l.b16 %v1603
        %v1696 = vunpack.c.h.b16 %v1603
        %v1697 = vunpack.c.l.b16 %v1604
        %v1698 = vunpack.c.h.b16 %v1604
        %v1699 = vunpack.c.l.b16 %v1605
        %v1700 = vunpack.c.h.b16 %v1605
        %v1701 = vunpack.c.l.b16 %v1606
        %v1702 = vunpack.c.h.b16 %v1606
        %v1703 = vpack.c.b16 %v1641, %v1639
        %v1704 = vpack.c.b16 %v1642, %v1640
        %v1705 = vpack.c.b16 %v1645, %v1643
        %v1706 = vpack.c.b16 %v1646, %v1644
        %v1707 = vpack.c.b16 %v1649, %v1647
        %v1708 = vpack.c.b16 %v1650, %v1648
        %v1709 = vpack.c.b16 %v1653, %v1651
        %v1710 = vpack.c.b16 %v1654, %v1652
        %v1711 = vpack.c.b16 %v1657, %v1655
        %v1712 = vpack.c.b16 %v1658, %v1656
        %v1713 = vpack.c.b16 %v1661, %v1659
        %v1714 = vpack.c.b16 %v1662, %v1660
        %v1715 = vpack.c.b16 %v1665, %v1663
        %v1716 = vpack.c.b16 %v1666, %v1664
        %v1717 = vpack.c.b16 %v1669, %v1667
        %v1718 = vpack.c.b16 %v1670, %v1668
        %v1719 = vpack.c.b16 %v1673, %v1671
        %v1720 = vpack.c.b16 %v1674, %v1672
        %v1721 = vpack.c.b16 %v1677, %v1675
        %v1722 = vpack.c.b16 %v1678, %v1676
        %v1723 = vpack.c.b16 %v1681, %v1679
        %v1724 = vpack.c.b16 %v1682, %v1680
        %v1725 = vpack.c.b16 %v1685, %v1683
        %v1726 = vpack.c.b16 %v1686, %v1684
        %v1727 = vpack.c.b16 %v1689, %v1687
        %v1728 = vpack.c.b16 %v1690, %v1688
        %v1729 = vpack.c.b16 %v1693, %v1691
        %v1730 = vpack.c.b16 %v1694, %v1692
        %v1731 = vpack.c.b16 %v1697, %v1695
        %v1732 = vpack.c.b16 %v1698, %v1696
        %v1733 = vpack.c.b16 %v1701, %v1699
        %v1734 = vpack.c.b16 %v1702, %v1700
        %1767 = vmatprep.subr.bf16.mxu0 %v1718
        %1768 = vmatpush1.bf16.msra.mxu0 %v1717
        %1769 = vmatprep.subr.bf16.mxu0 %v1716
        %1770 = vmatpush1.bf16.msra.mxu0 %v1715
        %1771 = vmatprep.subr.bf16.mxu0 %v1714
        %1772 = vmatpush1.bf16.msra.mxu0 %v1713
        %1773 = vmatprep.subr.bf16.mxu0 %v1712
        %1774 = vmatpush1.bf16.msra.mxu0 %v1711
        %1775 = vmatprep.subr.bf16.mxu0 %v1710
        %1776 = vmatpush1.bf16.msra.mxu0 %v1709
        %1777 = vmatprep.subr.bf16.mxu0 %v1708
        %1778 = vmatpush1.bf16.msra.mxu0 %v1707
        %1779 = vmatprep.subr.bf16.mxu0 %v1706
        %1780 = vmatpush1.bf16.msra.mxu0 %v1705
        %1781 = vmatprep.subr.bf16.mxu0 %v1704
        %1782 = vmatpush1.bf16.msra.mxu0 %v1703
        %1783 = vmatprep.subr.bf16.mxu0 %v1734
        %1784 = vmatpush2.bf16.msra.mxu0 %v1733
        %1785 = vmatprep.subr.bf16.mxu0 %v1732
        %1786 = vmatpush2.bf16.msra.mxu0 %v1731
        %1787 = vmatprep.subr.bf16.mxu0 %v1730
        %1788 = vmatpush2.bf16.msra.mxu0 %v1729
        %1789 = vmatprep.subr.bf16.mxu0 %v1728
        %1790 = vmatpush2.bf16.msra.mxu0 %v1727
        %1791 = vmatprep.subr.bf16.mxu0 %v1726
        %1792 = vmatpush2.bf16.msra.mxu0 %v1725
        %1793 = vmatprep.subr.bf16.mxu0 %v1724
        %1794 = vmatpush2.bf16.msra.mxu0 %v1723
        %1795 = vmatprep.subr.bf16.mxu0 %v1722
        %1796 = vmatpush2.bf16.msra.mxu0 %v1721
        %1797 = vmatprep.subr.bf16.mxu0 %v1720
        %1798 = vmatpush2.bf16.msra.mxu0 %v1719
        %1799 = vmatprep.mubr.bf16.mxu0 %v1102
        %1800 = vmatmul.mubr.bf16.gmra.mxu0 %v1101
        %v1801 = vpop.f32.mrf.mxu0
        %v1802 = vadd.f32 0.0, %v1801
        %v1803 = vpop.f32.mrf.mxu0
        %v1804 = vadd.f32 0.0, %v1803
        %v1805 = vpop.f32.mrf.mxu0
        %v1806 = vadd.f32 0.0, %v1805
        %v1807 = vpop.f32.mrf.mxu0
        %v1808 = vadd.f32 0.0, %v1807
        %1809 = vdwg.mxu0
        %v1810 = vadd.f32 %v1566, %v1802
        %v1811 = vadd.f32 %v1568, %v1804
        %v1812 = vadd.f32 %v1570, %v1806
        %v1813 = vadd.f32 %v1572, %v1808
        %v1815 = vlaneseq
        %v1816 = vshrl.u32 %v1815, 7
        %v1817 = vsub.s32 0, %v1816
        %v1818 = vrot.slane %v289, %v1817
        %v1819 = vlaneseq
        %v1820 = vshrl.u32 %v1819, 7
        %v1821 = vsub.s32 1, %v1820
        %v1822 = vrot.slane %v289, %v1821
        %v1825 = vmul.f32 %v1810, %v1818
        %v1826 = vmul.f32 %v1811, %v1822
        %v1827 = vmul.f32 %v1812, %v1818
        %v1828 = vmul.f32 %v1813, %v1822
        %v1830 = vlaneseq
        %v1831 = vshrl.u32 %v1830, 7
        %v1832 = vsub.s32 0, %v1831
        %v1833 = vrot.slane %v291, %v1832
        %v1834 = vlaneseq
        %v1835 = vshrl.u32 %v1834, 7
        %v1836 = vsub.s32 1, %v1835
        %v1837 = vrot.slane %v291, %v1836
        %v1840 = vadd.f32 %v1825, %v1833
        %v1841 = vadd.f32 %v1826, %v1837
        %v1842 = vadd.f32 %v1827, %v1833
        %v1843 = vadd.f32 %v1828, %v1837
        %v1844 = vmax.f32 %v1840, 0.0
        %v1845 = vmax.f32 %v1841, 0.0
        %v1846 = vmax.f32 %v1842, 0.0
        %v1847 = vmax.f32 %v1843, 0.0
        %v1848 = vadd.f32 %v1844, %v292
        %v1849 = vadd.f32 %v1845, %v293
        %v1850 = vadd.f32 %v1846, %v294
        %v1851 = vadd.f32 %v1847, %v295
        %1852 = vst [vmem:[%s284] sm:$0xff] %v1848
        %1853 = vst [vmem:[%s284 + $0x8] sm:$0xff] %v1849
        %1854 = vst [vmem:[%s284 + $0x10] sm:$0xff] %v1850
        %1855 = vst [vmem:[%s284 + $0x18] sm:$0xff] %v1851
        %s1856 = sand.u32 %s142, 1
        %s1857 = scalar_lea.sflag [#allocation4], %s1856
        %s1858 = sand.u32 %s142, 1
        %s1859 = smul.addr %s1858, 32
        %s1860 = scalar_lea.vmem [#allocation10], %s1859
        // Predicated region
        $region57: #{tpu_custom_call.1} parent=39 // pred_check
          %p1861 = pneg %p152
        $region58: #{tpu_custom_call.1} parent=39 // pred_check_branch
          %1863 = sbr.rel (%p1861) target = $region60
        $region59: #{tpu_custom_call.1} parent=39 // pred_region
          %s1865 = ssub.s32 512, 512
          %1866 = vsyncadd %s1857, %s1865
          %s1867 = smul.addr %s24, 4
          %s1868 = smul.addr %s1867, 128
          %s1869 = scalar_lea.hbm %s5, %s1868
          %s1870 = sshll.u32 %s1860, 4
          %s1871 = int_to_ptr.vmem [resolvable:$true] %s1870
          %1876 = dma.vmem_to_hbm [thread:$0]  %s1871, 512, %s1869, %s1857, 256, 256, 16
        $region60: #{tpu_custom_call.1} parent=39 // pred_fallthru
          _
      $region40: #{tpu_custom_call.1} parent=5 // pred_fallthru
        _
      %p1877 = scmp.le.s32.totalorder 2, %s19
      // Predicated region
      $region61: #{tpu_custom_call.1} parent=5 // pred_check
        %p1878 = pneg %p1877
      $region62: #{tpu_custom_call.1} parent=5 // pred_check_branch
        %1880 = sbr.rel (%p1878) target = $region64
      $region63: #{tpu_custom_call.1} parent=5 // pred_region
        %s1881 = ssub.s32 %s19, 2
        // Predicated region
        $region65: #{tpu_custom_call.1} parent=63 // pred_check
          %p1882 = pneg %p158
        $region66: #{tpu_custom_call.1} parent=63 // pred_check_branch
          %1884 = sbr.rel (%p1882) target = $region68
        $region67: #{tpu_custom_call.1} parent=63 // pred_region
          %s1885 = sand.u32 %s143, 1
          %s1886 = scalar_lea.sflag [#allocation4], %s1885
          %s1887 = sand.u32 %s143, 1
          %s1888 = smul.addr %s1887, 32
          %s1889 = scalar_lea.vmem [#allocation10], %s1888
          %1890 = dma.done %s1886, 512
        $region68: #{tpu_custom_call.1} parent=63 // pred_fallthru
          _
      $region64: #{tpu_custom_call.1} parent=5 // pred_fallthru
        _
    $region6: #{tpu_custom_call.1} parent=1 // loop_footer
      %s23 = sadd.s32 1, %s19
    $region7: #{tpu_custom_call.1} parent=1 // loop_footer_branch
      %18 = sbr.rel target = $region3
    $region8: #{tpu_custom_call.1} parent=1 // loop_exit
      _
    %1891 = vsyncpa [#allocation3], 1
    %s1892 = scalar_lea.sflag [#allocation3], 1
    %1893 = vsyncpa %s1892, 1
    %1894 = vsyncpa [#allocation6], 1
    %1895 = vsyncpa [#allocation9], 1
    %1896 = vsyncpa [#allocation4], 1
    %s1897 = scalar_lea.sflag [#allocation4], 1
    %1898 = vsyncpa %s1897, 1

</llo_original>
